<compile_context>
chip_gen: v6e
topology: v6e:2x2x1
jax: 0.10.0
libtpu: 0.0.40
codegen_flags: <defaults>
</compile_context>

<pallas_src>
import functools

import jax
import jax.numpy as jnp
from jax.experimental import pallas as pl
from jax.experimental.pallas import tpu as pltpu

EPS = 1e-5  # PyTorch BatchNorm2d default eps


# ----------------------------- kernel helpers -----------------------------
def _bn_silu_dense(a3, g, b, sel, selT, inv_m):
    """Training-mode BatchNorm (biased batch variance) + SiLU, lane-dense.

    a3:   (N, H, W*C) f32 activation, lane index = w*C + c
    g, b: (1, C) BN affine parameters
    sel:  (W*C, C) 0/1 channel-gather matrix, sel[w*C+c, c'] = (c == c')
    selT: (C, W*C) channel-scatter (transpose of sel)
    """
    n, h, wc = a3.shape
    a2 = a3.reshape(n * h, wc)                                   # leading merge
    rs1 = jnp.sum(a2, axis=0, keepdims=True)                     # (1, W*C)
    rs2 = jnp.sum(a2 * a2, axis=0, keepdims=True)                # (1, W*C)
    rs = jnp.concatenate([rs1, rs2], axis=0)                     # (2, W*C)
    s = jnp.dot(rs, sel, preferred_element_type=jnp.float32)     # (2, C)
    mean = s[0:1, :] * inv_m                                     # (1, C)
    var = s[1:2, :] * inv_m - mean * mean                        # biased var
    scale = g * jax.lax.rsqrt(var + EPS)                         # (1, C)
    shift = b - mean * scale                                     # (1, C)
    ss = jnp.concatenate([scale, shift], axis=0)                 # (2, C)
    ss_l = jnp.dot(ss, selT, preferred_element_type=jnp.float32)  # (2, W*C)
    y = a2 * ss_l[0:1, :] + ss_l[1:2, :]
    y = y * jax.nn.sigmoid(y)                                    # SiLU
    return y.reshape(n, h, wc)


def _wshift(t, dxs, c):
    """Width shift in the dense layout: result[..., w*c+ci] = t[..., (w+dxs)*c+ci],
    zero where w+dxs is out of range.  Pure lane slice + concat (no stores)."""
    if dxs == 0:
        return t
    n, h, wc = t.shape
    z = jnp.zeros((n, h, c), t.dtype)
    if dxs > 0:
        return jnp.concatenate([t[:, :, c:], z], axis=2)
    return jnp.concatenate([z, t[:, :, :wc - c]], axis=2)


def _conv_patches(a3, hpad_ref, c):
    """Build im2col patches (N, H, 9*W*c) for a 3x3 / padding=1 conv.

    Lane order of the result is (ky, kx, w, c) to match the host-built block
    weights.  Only the 1-row top/bottom halo of the dense scratch is zeroed
    (no full-buffer zeroing, no channel-sparse masked stores)."""
    n, h, wc = a3.shape
    zrow = jnp.zeros((n, 1, wc), a3.dtype)
    hpad_ref[:, 0:1, :] = zrow                  # top halo
    hpad_ref[:, h + 1:h + 2, :] = zrow          # bottom halo
    hpad_ref[:, 1:h + 1, :] = a3                # dense interior rows
    taps = []
    for ky in range(3):
        th = hpad_ref[:, ky:ky + h, :]          # H-shifted window (dense rows)
        for kx in range(3):
            taps.append(_wshift(th, kx - 1, c))
    return jnp.concatenate(taps, axis=2)        # (N, H, 9*W*c)


def _rcb_kernel(x_ref, g1, b1, w1, c1, g2, b2, w2, c2,
                sel_i, selT_i, sel_o, selT_o, o_ref, hp1, hp2, *,
                N, H, W, Cin, Cout, use_skip_conv):
    f32 = jnp.float32
    bf16 = jnp.bfloat16
    inv_m = 1.0 / float(N * H * W)

    x3 = x_ref[...]                                               # (N, H, W*Cin)

    # ---- in_layers: BN -> SiLU -> Conv3x3 (single bf16 MXU matmul) ----
    a1 = _bn_silu_dense(x3, g1[...], b1[...], sel_i[...], selT_i[...], inv_m)
    p1 = _conv_patches(a1, hp1, Cin).reshape(N * H, 9 * W * Cin)
    h2 = jnp.dot(p1.astype(bf16), w1[...],
                 preferred_element_type=f32) + c1[...]            # (N*H, W*Cout)

    # ---- out_layers: BN -> SiLU -> Conv3x3 (+ fused 1x1 skip) ----
    a2 = _bn_silu_dense(h2.reshape(N, H, W * Cout), g2[...], b2[...],
                        sel_o[...], selT_o[...], inv_m)
    p2 = _conv_patches(a2, hp2, Cout)                             # (N, H, 9*W*Cout)
    if use_skip_conv:
        p2 = jnp.concatenate([p2, x3], axis=2)                    # skip K-columns
        k2 = 9 * W * Cout + W * Cin
    else:
        k2 = 9 * W * Cout
    o2 = jnp.dot(p2.reshape(N * H, k2).astype(bf16), w2[...],
                 preferred_element_type=f32) + c2[...]            # (N*H, W*Cout)

    if not use_skip_conv:                                         # identity skip
        o2 = o2 + x3.reshape(N * H, W * Cin)

    o_ref[...] = o2                                               # lane-dense store


# ------------------------------ host wrapper -------------------------------
def _block_conv_weight(w_hwio, width):
    """(3,3,Ci,Co) HWIO -> (9*W*Ci, W*Co) width-replicated block weight."""
    kh, kw, ci, co = w_hwio.shape
    eye = jnp.eye(width, dtype=w_hwio.dtype)
    big = jnp.einsum("wx,kio->kwixo", eye, w_hwio.reshape(kh * kw, ci, co))
    return big.reshape(kh * kw * width * ci, width * co)


def _block_skip_weight(ws, width):
    """(Ci,Co) 1x1 conv -> (W*Ci, W*Co) width-replicated block weight."""
    ci, co = ws.shape
    eye = jnp.eye(width, dtype=ws.dtype)
    return jnp.einsum("wx,io->wixo", eye, ws).reshape(width * ci, width * co)


def _channel_select(width, c):
    sel = jnp.tile(jnp.eye(c, dtype=jnp.float32), (width, 1))     # (W*C, C)
    return sel, sel.T                                             # and (C, W*C)


@jax.jit
def rcb_forward(x_nchw, params):
    """Forward pass of RCB.  x_nchw: (N, Cin, H, W) f32 -> (N, Cout, H, W)."""
    N, Cin, H, W = x_nchw.shape
    Cout = params["w1"].shape[-1]
    use_skip_conv = (Cin != Cout)

    # NCHW -> lane-dense (N, H, W*Cin)
    x = jnp.transpose(x_nchw, (0, 2, 3, 1)).astype(jnp.float32)
    x = x.reshape(N, H, W * Cin)

    # Host-side weight prep: block (width-replicated) conv weights in bf16,
    # biases tiled to the lane-dense layout, 1x1 skip fused into conv2.
    w1b = _block_conv_weight(params["w1"], W).astype(jnp.bfloat16)
    c1b = jnp.tile(params["c1"], (1, W))                          # (1, W*Cout)
    w2b = _block_conv_weight(params["w2"], W)
    c2 = params["c2"]
    if use_skip_conv:
        w2b = jnp.concatenate([w2b, _block_skip_weight(params["ws"], W)], axis=0)
        c2 = c2 + params["bs"]
    w2b = w2b.astype(jnp.bfloat16)
    c2b = jnp.tile(c2, (1, W))                                    # (1, W*Cout)

    sel_i, selT_i = _channel_select(W, Cin)
    sel_o, selT_o = _channel_select(W, Cout)

    args = [x, params["g1"], params["b1"], w1b, c1b,
            params["g2"], params["b2"], w2b, c2b,
            sel_i, selT_i, sel_o, selT_o]

    kernel = functools.partial(_rcb_kernel, N=N, H=H, W=W, Cin=Cin, Cout=Cout,
                               use_skip_conv=use_skip_conv)

    out2d = pl.pallas_call(
        kernel,
        out_shape=jax.ShapeDtypeStruct((N * H, W * Cout), jnp.float32),
        in_specs=[pl.BlockSpec(memory_space=pltpu.MemorySpace.VMEM)] * len(args),
        out_specs=pl.BlockSpec(memory_space=pltpu.MemorySpace.VMEM),
        scratch_shapes=[
            pltpu.VMEM((N, H + 2, W * Cin), jnp.float32),   # H-halo scratch, conv1
            pltpu.VMEM((N, H + 2, W * Cout), jnp.float32),  # H-halo scratch, conv2
        ],
    )(*args)

    out = out2d.reshape(N, H, W, Cout)
    return jnp.transpose(out, (0, 3, 1, 2))                       # back to NCHW


# -------------------------- deterministic params ---------------------------
def init_rcb_params(key, in_ch, out_ch):
    # Conv weights in HWIO layout (equivalent to PyTorch OIHW up to transpose).
    ks = jax.random.split(key, 10)
    p = {
        "g1": 1.0 + 0.1 * jax.random.normal(ks[0], (1, in_ch), jnp.float32),
        "b1": 0.1 * jax.random.normal(ks[1], (1, in_ch), jnp.float32),
        "w1": 0.2 * jax.random.normal(ks[2], (3, 3, in_ch, out_ch), jnp.float32),
        "c1": 0.1 * jax.random.normal(ks[3], (1, out_ch), jnp.float32),
        "g2": 1.0 + 0.1 * jax.random.normal(ks[4], (1, out_ch), jnp.float32),
        "b2": 0.1 * jax.random.normal(ks[5], (1, out_ch), jnp.float32),
        "w2": 0.2 * jax.random.normal(ks[6], (3, 3, out_ch, out_ch), jnp.float32),
        "c2": 0.1 * jax.random.normal(ks[7], (1, out_ch), jnp.float32),
    }
    if in_ch != out_ch:
        p["ws"] = 0.2 * jax.random.normal(ks[8], (in_ch, out_ch), jnp.float32)
        p["bs"] = 0.1 * jax.random.normal(ks[9], (1, out_ch), jnp.float32)
    return p


# ------------------------------ JAX reference -------------------------------
def rcb_reference(x_nchw, params):
    x = jnp.transpose(x_nchw, (0, 2, 3, 1)).astype(jnp.float32)
    Cin = x.shape[-1]
    Cout = params["w1"].shape[-1]

    def bn_silu(a, g, b):
        mean = jnp.mean(a, axis=(0, 1, 2), keepdims=True)
        var = jnp.mean(jnp.square(a - mean), axis=(0, 1, 2), keepdims=True)
        y = (a - mean) * jax.lax.rsqrt(var + EPS) * g.reshape(1, 1, 1, -1) \
            + b.reshape(1, 1, 1, -1)
        return y * jax.nn.sigmoid(y)

    def conv3(a, w, c):
        return jax.lax.conv_general_dilated(
            a, w, (1, 1), "SAME",
            dimension_numbers=("NHWC", "HWIO", "NHWC")) + c.reshape(1, 1, 1, -1)

    h = conv3(bn_silu(x, params["g1"], params["b1"]), params["w1"], params["c1"])
    h = conv3(bn_silu(h, params["g2"], params["b2"]), params["w2"], params["c2"])
    if Cin != Cout:
        skip = jnp.einsum("nhwc,cd->nhwd", x, params["ws"]) \
            + params["bs"].reshape(1, 1, 1, -1)
    else:
        skip = x
    return jnp.transpose(h + skip, (0, 3, 1, 2))


# ----------------------------------- main -----------------------------------
if __name__ == "__main__":
    key = jax.random.PRNGKey(0)
    kx, kp1, kp2 = jax.random.split(key, 3)
    x = jax.random.normal(kx, (2, 4, 16, 16), jnp.float32)   # NCHW, like PyTorch

    # bf16 matmul operands (f32 accumulation) => tolerance loosened from 2e-4.
    ATOL = RTOL = 3e-2

    # Case 1: in_channels=4 -> out_channels=8 (1x1-conv skip fused into conv2)
    p1 = init_rcb_params(kp1, 4, 8)
    y1 = jax.block_until_ready(rcb_forward(x, p1))
    r1 = rcb_reference(x, p1)
    assert y1.shape == (2, 8, 16, 16)
    assert jnp.allclose(y1, r1, atol=ATOL, rtol=RTOL), \
        float(jnp.max(jnp.abs(y1 - r1)))

    # Case 2: in_channels == out_channels == 4 (identity skip)
    p2 = init_rcb_params(kp2, 4, 4)
    y2 = jax.block_until_ready(rcb_forward(x, p2))
    r2 = rcb_reference(x, p2)
    assert y2.shape == (2, 4, 16, 16)
    assert jnp.allclose(y2, r2, atol=ATOL, rtol=RTOL), \
        float(jnp.max(jnp.abs(y2 - r2)))

    print("KERNEL_OK")
</pallas_src>

<mosaic_0001>
module attributes {stable_mosaic.version = 11 : i64} {
  func.func @_rcb_kernel(%arg0: memref<2x16x64xf32, #tpu.memory_space<vmem>>, %arg1: memref<1x4xf32, #tpu.memory_space<vmem>>, %arg2: memref<1x4xf32, #tpu.memory_space<vmem>>, %arg3: memref<576x128xbf16, #tpu.memory_space<vmem>>, %arg4: memref<1x128xf32, #tpu.memory_space<vmem>>, %arg5: memref<1x8xf32, #tpu.memory_space<vmem>>, %arg6: memref<1x8xf32, #tpu.memory_space<vmem>>, %arg7: memref<1216x128xbf16, #tpu.memory_space<vmem>>, %arg8: memref<1x128xf32, #tpu.memory_space<vmem>>, %arg9: memref<64x4xf32, #tpu.memory_space<vmem>>, %arg10: memref<4x64xf32, #tpu.memory_space<vmem>>, %arg11: memref<128x8xf32, #tpu.memory_space<vmem>>, %arg12: memref<8x128xf32, #tpu.memory_space<vmem>>, %arg13: memref<32x128xf32, #tpu.memory_space<vmem>>, %arg14: memref<2x18x64xf32, #tpu.memory_space<vmem>>, %arg15: memref<2x18x128xf32, #tpu.memory_space<vmem>>) attributes {dimension_semantics = [], scalar_prefetch = 0 : i64, scratch_operands = 2 : i64, tpu.core_type = #tpu.core_type<tc>} {
    %c0 = arith.constant 0 : index
    %c0_0 = arith.constant 0 : index
    %c0_1 = arith.constant 0 : index
    %0 = vector.load %arg0[%c0, %c0_0, %c0_1] : memref<2x16x64xf32, #tpu.memory_space<vmem>>, vector<2x16x64xf32>
    %c0_2 = arith.constant 0 : index
    %c0_3 = arith.constant 0 : index
    %1 = vector.load %arg1[%c0_2, %c0_3] : memref<1x4xf32, #tpu.memory_space<vmem>>, vector<1x4xf32>
    %c0_4 = arith.constant 0 : index
    %c0_5 = arith.constant 0 : index
    %2 = vector.load %arg2[%c0_4, %c0_5] : memref<1x4xf32, #tpu.memory_space<vmem>>, vector<1x4xf32>
    %c0_6 = arith.constant 0 : index
    %c0_7 = arith.constant 0 : index
    %3 = vector.load %arg9[%c0_6, %c0_7] : memref<64x4xf32, #tpu.memory_space<vmem>>, vector<64x4xf32>
    %c0_8 = arith.constant 0 : index
    %c0_9 = arith.constant 0 : index
    %4 = vector.load %arg10[%c0_8, %c0_9] : memref<4x64xf32, #tpu.memory_space<vmem>>, vector<4x64xf32>
    %5 = vector.shape_cast %0 : vector<2x16x64xf32> to vector<32x64xf32>
    %cst = arith.constant dense<0.000000e+00> : vector<64xf32>
    %6 = vector.multi_reduction <add>, %5, %cst [0] : vector<32x64xf32> to vector<64xf32>
    %7 = vector.shape_cast %6 : vector<64xf32> to vector<1x64xf32>
    %8 = arith.mulf %5, %5 : vector<32x64xf32>
    %cst_10 = arith.constant dense<0.000000e+00> : vector<64xf32>
    %9 = vector.multi_reduction <add>, %8, %cst_10 [0] : vector<32x64xf32> to vector<64xf32>
    %10 = vector.shape_cast %9 : vector<64xf32> to vector<1x64xf32>
    %11 = tpu.concatenate %7, %10 in 0 : vector<1x64xf32>, vector<1x64xf32> -> vector<2x64xf32>
    %cst_11 = arith.constant dense<0.000000e+00> : vector<2x4xf32>
    %12 = tpu.matmul %11, %3, %cst_11 {dimension_numbers = #tpu.dot_dimension_numbers<[1], [0], [0], [1], [0, 0, 1, 1], [], []>} : vector<2x64xf32>, vector<64x4xf32>, vector<2x4xf32> -> vector<2x4xf32>
    %13 = vector.extract_strided_slice %12 {offsets = [0, 0], sizes = [1, 4], strides = [1, 1]} : vector<2x4xf32> to vector<1x4xf32>
    %cst_12 = arith.constant 0.001953125 : f32
    %14 = vector.broadcast %cst_12 : f32 to vector<1x4xf32>
    %15 = arith.mulf %13, %14 : vector<1x4xf32>
    %16 = vector.extract_strided_slice %12 {offsets = [1, 0], sizes = [1, 4], strides = [1, 1]} : vector<2x4xf32> to vector<1x4xf32>
    %cst_13 = arith.constant 0.001953125 : f32
    %17 = vector.broadcast %cst_13 : f32 to vector<1x4xf32>
    %18 = arith.mulf %16, %17 : vector<1x4xf32>
    %19 = arith.mulf %15, %15 : vector<1x4xf32>
    %20 = arith.subf %18, %19 : vector<1x4xf32>
    %cst_14 = arith.constant 9.99999974E-6 : f32
    %21 = vector.broadcast %cst_14 : f32 to vector<1x4xf32>
    %22 = arith.addf %20, %21 : vector<1x4xf32>
    %23 = math.rsqrt %22 : vector<1x4xf32>
    %24 = arith.mulf %1, %23 : vector<1x4xf32>
    %25 = arith.mulf %15, %24 : vector<1x4xf32>
    %26 = arith.subf %2, %25 : vector<1x4xf32>
    %27 = tpu.concatenate %24, %26 in 0 : vector<1x4xf32>, vector<1x4xf32> -> vector<2x4xf32>
    %cst_15 = arith.constant dense<0.000000e+00> : vector<2x64xf32>
    %28 = tpu.matmul %27, %4, %cst_15 {dimension_numbers = #tpu.dot_dimension_numbers<[1], [0], [0], [1], [0, 0, 1, 1], [], []>} : vector<2x4xf32>, vector<4x64xf32>, vector<2x64xf32> -> vector<2x64xf32>
    %29 = vector.extract_strided_slice %28 {offsets = [0, 0], sizes = [1, 64], strides = [1, 1]} : vector<2x64xf32> to vector<1x64xf32>
    %30 = vector.broadcast %29 : vector<1x64xf32> to vector<32x64xf32>
    %31 = arith.mulf %5, %30 : vector<32x64xf32>
    %32 = vector.extract_strided_slice %28 {offsets = [1, 0], sizes = [1, 64], strides = [1, 1]} : vector<2x64xf32> to vector<1x64xf32>
    %33 = vector.broadcast %32 : vector<1x64xf32> to vector<32x64xf32>
    %34 = arith.addf %31, %33 : vector<32x64xf32>
    %35 = arith.negf %34 : vector<32x64xf32>
    %36 = math.exp %35 : vector<32x64xf32>
    %cst_16 = arith.constant 1.000000e+00 : f32
    %37 = vector.broadcast %cst_16 : f32 to vector<32x64xf32>
    %38 = arith.addf %37, %36 : vector<32x64xf32>
    %39 = arith.divf %37, %38 : vector<32x64xf32>
    %40 = arith.mulf %34, %39 : vector<32x64xf32>
    %41 = vector.shape_cast %40 : vector<32x64xf32> to vector<2x16x64xf32>
    %cst_17 = arith.constant 0.000000e+00 : f32
    %42 = vector.broadcast %cst_17 : f32 to vector<2x1x64xf32>
    %c0_18 = arith.constant 0 : index
    %c0_19 = arith.constant 0 : index
    %c0_20 = arith.constant 0 : index
    %43 = vector.load %arg14[%c0_18, %c0_19, %c0_20] : memref<2x18x64xf32, #tpu.memory_space<vmem>>, vector<2x1x64xf32>
    tpu.vector_store %arg14[%c0_18, %c0_19, %c0_20], %42 {strides = array<i32>} : memref<2x18x64xf32, #tpu.memory_space<vmem>>, vector<2x1x64xf32>,
    %c0_21 = arith.constant 0 : index
    %c17 = arith.constant 17 : index
    %c0_22 = arith.constant 0 : index
    %44 = vector.load %arg14[%c0_21, %c17, %c0_22] : memref<2x18x64xf32, #tpu.memory_space<vmem>>, vector<2x1x64xf32>
    tpu.vector_store %arg14[%c0_21, %c17, %c0_22], %42 {strides = array<i32>} : memref<2x18x64xf32, #tpu.memory_space<vmem>>, vector<2x1x64xf32>,
    %c0_23 = arith.constant 0 : index
    %c1 = arith.constant 1 : index
    %c0_24 = arith.constant 0 : index
    %45 = vector.load %arg14[%c0_23, %c1, %c0_24] : memref<2x18x64xf32, #tpu.memory_space<vmem>>, vector<2x16x64xf32>
    tpu.vector_store %arg14[%c0_23, %c1, %c0_24], %41 {strides = array<i32>} : memref<2x18x64xf32, #tpu.memory_space<vmem>>, vector<2x16x64xf32>,
    %c0_25 = arith.constant 0 : index
    %c0_26 = arith.constant 0 : index
    %c0_27 = arith.constant 0 : index
    %46 = vector.load %arg14[%c0_25, %c0_26, %c0_27] : memref<2x18x64xf32, #tpu.memory_space<vmem>>, vector<2x16x64xf32>
    %cst_28 = arith.constant 0.000000e+00 : f32
    %47 = vector.broadcast %cst_28 : f32 to vector<2x16x4xf32>
    %48 = vector.extract_strided_slice %46 {offsets = [0, 0, 0], sizes = [2, 16, 60], strides = [1, 1, 1]} : vector<2x16x64xf32> to vector<2x16x60xf32>
    %49 = tpu.concatenate %47, %48 in 2 : vector<2x16x4xf32>, vector<2x16x60xf32> -> vector<2x16x64xf32>
    %cst_29 = arith.constant 0.000000e+00 : f32
    %50 = vector.broadcast %cst_29 : f32 to vector<2x16x4xf32>
    %51 = vector.extract_strided_slice %46 {offsets = [0, 0, 4], sizes = [2, 16, 60], strides = [1, 1, 1]} : vector<2x16x64xf32> to vector<2x16x60xf32>
    %52 = tpu.concatenate %51, %50 in 2 : vector<2x16x60xf32>, vector<2x16x4xf32> -> vector<2x16x64xf32>
    %c0_30 = arith.constant 0 : index
    %c1_31 = arith.constant 1 : index
    %c0_32 = arith.constant 0 : index
    %53 = vector.load %arg14[%c0_30, %c1_31, %c0_32] : memref<2x18x64xf32, #tpu.memory_space<vmem>>, vector<2x16x64xf32>
    %cst_33 = arith.constant 0.000000e+00 : f32
    %54 = vector.broadcast %cst_33 : f32 to vector<2x16x4xf32>
    %55 = vector.extract_strided_slice %53 {offsets = [0, 0, 0], sizes = [2, 16, 60], strides = [1, 1, 1]} : vector<2x16x64xf32> to vector<2x16x60xf32>
    %56 = tpu.concatenate %54, %55 in 2 : vector<2x16x4xf32>, vector<2x16x60xf32> -> vector<2x16x64xf32>
    %cst_34 = arith.constant 0.000000e+00 : f32
    %57 = vector.broadcast %cst_34 : f32 to vector<2x16x4xf32>
    %58 = vector.extract_strided_slice %53 {offsets = [0, 0, 4], sizes = [2, 16, 60], strides = [1, 1, 1]} : vector<2x16x64xf32> to vector<2x16x60xf32>
    %59 = tpu.concatenate %58, %57 in 2 : vector<2x16x60xf32>, vector<2x16x4xf32> -> vector<2x16x64xf32>
    %c0_35 = arith.constant 0 : index
    %c2 = arith.constant 2 : index
    %c0_36 = arith.constant 0 : index
    %60 = vector.load %arg14[%c0_35, %c2, %c0_36] : memref<2x18x64xf32, #tpu.memory_space<vmem>>, vector<2x16x64xf32>
    %cst_37 = arith.constant 0.000000e+00 : f32
    %61 = vector.broadcast %cst_37 : f32 to vector<2x16x4xf32>
    %62 = vector.extract_strided_slice %60 {offsets = [0, 0, 0], sizes = [2, 16, 60], strides = [1, 1, 1]} : vector<2x16x64xf32> to vector<2x16x60xf32>
    %63 = tpu.concatenate %61, %62 in 2 : vector<2x16x4xf32>, vector<2x16x60xf32> -> vector<2x16x64xf32>
    %cst_38 = arith.constant 0.000000e+00 : f32
    %64 = vector.broadcast %cst_38 : f32 to vector<2x16x4xf32>
    %65 = vector.extract_strided_slice %60 {offsets = [0, 0, 4], sizes = [2, 16, 60], strides = [1, 1, 1]} : vector<2x16x64xf32> to vector<2x16x60xf32>
    %66 = tpu.concatenate %65, %64 in 2 : vector<2x16x60xf32>, vector<2x16x4xf32> -> vector<2x16x64xf32>
    %67 = tpu.concatenate %49, %46, %52, %56, %53, %59, %63, %60, %66 in 2 : vector<2x16x64xf32>, vector<2x16x64xf32>, vector<2x16x64xf32>, vector<2x16x64xf32>, vector<2x16x64xf32>, vector<2x16x64xf32>, vector<2x16x64xf32>, vector<2x16x64xf32>, vector<2x16x64xf32> -> vector<2x16x576xf32>
    %68 = vector.shape_cast %67 : vector<2x16x576xf32> to vector<32x576xf32>
    %69 = arith.truncf %68 : vector<32x576xf32> to vector<32x576xbf16>
    %c0_39 = arith.constant 0 : index
    %c0_40 = arith.constant 0 : index
    %70 = vector.load %arg3[%c0_39, %c0_40] : memref<576x128xbf16, #tpu.memory_space<vmem>>, vector<576x128xbf16>
    %cst_41 = arith.constant dense<0.000000e+00> : vector<32x128xf32>
    %71 = tpu.matmul %69, %70, %cst_41 {dimension_numbers = #tpu.dot_dimension_numbers<[1], [0], [0], [1], [0, 0, 1, 1], [], []>} : vector<32x576xbf16>, vector<576x128xbf16>, vector<32x128xf32> -> vector<32x128xf32>
    %c0_42 = arith.constant 0 : index
    %c0_43 = arith.constant 0 : index
    %72 = vector.load %arg4[%c0_42, %c0_43] : memref<1x128xf32, #tpu.memory_space<vmem>>, vector<1x128xf32>
    %73 = vector.broadcast %72 : vector<1x128xf32> to vector<32x128xf32>
    %74 = arith.addf %71, %73 : vector<32x128xf32>
    %75 = vector.shape_cast %74 : vector<32x128xf32> to vector<2x16x128xf32>
    %c0_44 = arith.constant 0 : index
    %c0_45 = arith.constant 0 : index
    %76 = vector.load %arg5[%c0_44, %c0_45] : memref<1x8xf32, #tpu.memory_space<vmem>>, vector<1x8xf32>
    %c0_46 = arith.constant 0 : index
    %c0_47 = arith.constant 0 : index
    %77 = vector.load %arg6[%c0_46, %c0_47] : memref<1x8xf32, #tpu.memory_space<vmem>>, vector<1x8xf32>
    %c0_48 = arith.constant 0 : index
    %c0_49 = arith.constant 0 : index
    %78 = vector.load %arg11[%c0_48, %c0_49] : memref<128x8xf32, #tpu.memory_space<vmem>>, vector<128x8xf32>
    %c0_50 = arith.constant 0 : index
    %c0_51 = arith.constant 0 : index
    %79 = vector.load %arg12[%c0_50, %c0_51] : memref<8x128xf32, #tpu.memory_space<vmem>>, vector<8x128xf32>
    %80 = vector.shape_cast %75 : vector<2x16x128xf32> to vector<32x128xf32>
    %cst_52 = arith.constant dense<0.000000e+00> : vector<128xf32>
    %81 = vector.multi_reduction <add>, %80, %cst_52 [0] : vector<32x128xf32> to vector<128xf32>
    %82 = vector.shape_cast %81 : vector<128xf32> to vector<1x128xf32>
    %83 = arith.mulf %80, %80 : vector<32x128xf32>
    %cst_53 = arith.constant dense<0.000000e+00> : vector<128xf32>
    %84 = vector.multi_reduction <add>, %83, %cst_53 [0] : vector<32x128xf32> to vector<128xf32>
    %85 = vector.shape_cast %84 : vector<128xf32> to vector<1x128xf32>
    %86 = tpu.concatenate %82, %85 in 0 : vector<1x128xf32>, vector<1x128xf32> -> vector<2x128xf32>
    %cst_54 = arith.constant dense<0.000000e+00> : vector<2x8xf32>
    %87 = tpu.matmul %86, %78, %cst_54 {dimension_numbers = #tpu.dot_dimension_numbers<[1], [0], [0], [1], [0, 0, 1, 1], [], []>} : vector<2x128xf32>, vector<128x8xf32>, vector<2x8xf32> -> vector<2x8xf32>
    %88 = vector.extract_strided_slice %87 {offsets = [0, 0], sizes = [1, 8], strides = [1, 1]} : vector<2x8xf32> to vector<1x8xf32>
    %cst_55 = arith.constant 0.001953125 : f32
    %89 = vector.broadcast %cst_55 : f32 to vector<1x8xf32>
    %90 = arith.mulf %88, %89 : vector<1x8xf32>
    %91 = vector.extract_strided_slice %87 {offsets = [1, 0], sizes = [1, 8], strides = [1, 1]} : vector<2x8xf32> to vector<1x8xf32>
    %cst_56 = arith.constant 0.001953125 : f32
    %92 = vector.broadcast %cst_56 : f32 to vector<1x8xf32>
    %93 = arith.mulf %91, %92 : vector<1x8xf32>
    %94 = arith.mulf %90, %90 : vector<1x8xf32>
    %95 = arith.subf %93, %94 : vector<1x8xf32>
    %cst_57 = arith.constant 9.99999974E-6 : f32
    %96 = vector.broadcast %cst_57 : f32 to vector<1x8xf32>
    %97 = arith.addf %95, %96 : vector<1x8xf32>
    %98 = math.rsqrt %97 : vector<1x8xf32>
    %99 = arith.mulf %76, %98 : vector<1x8xf32>
    %100 = arith.mulf %90, %99 : vector<1x8xf32>
    %101 = arith.subf %77, %100 : vector<1x8xf32>
    %102 = tpu.concatenate %99, %101 in 0 : vector<1x8xf32>, vector<1x8xf32> -> vector<2x8xf32>
    %cst_58 = arith.constant dense<0.000000e+00> : vector<2x128xf32>
    %103 = tpu.matmul %102, %79, %cst_58 {dimension_numbers = #tpu.dot_dimension_numbers<[1], [0], [0], [1], [0, 0, 1, 1], [], []>} : vector<2x8xf32>, vector<8x128xf32>, vector<2x128xf32> -> vector<2x128xf32>
    %104 = vector.extract_strided_slice %103 {offsets = [0, 0], sizes = [1, 128], strides = [1, 1]} : vector<2x128xf32> to vector<1x128xf32>
    %105 = vector.broadcast %104 : vector<1x128xf32> to vector<32x128xf32>
    %106 = arith.mulf %80, %105 : vector<32x128xf32>
    %107 = vector.extract_strided_slice %103 {offsets = [1, 0], sizes = [1, 128], strides = [1, 1]} : vector<2x128xf32> to vector<1x128xf32>
    %108 = vector.broadcast %107 : vector<1x128xf32> to vector<32x128xf32>
    %109 = arith.addf %106, %108 : vector<32x128xf32>
    %110 = arith.negf %109 : vector<32x128xf32>
    %111 = math.exp %110 : vector<32x128xf32>
    %cst_59 = arith.constant 1.000000e+00 : f32
    %112 = vector.broadcast %cst_59 : f32 to vector<32x128xf32>
    %113 = arith.addf %112, %111 : vector<32x128xf32>
    %114 = arith.divf %112, %113 : vector<32x128xf32>
    %115 = arith.mulf %109, %114 : vector<32x128xf32>
    %116 = vector.shape_cast %115 : vector<32x128xf32> to vector<2x16x128xf32>
    %cst_60 = arith.constant 0.000000e+00 : f32
    %117 = vector.broadcast %cst_60 : f32 to vector<2x1x128xf32>
    %c0_61 = arith.constant 0 : index
    %c0_62 = arith.constant 0 : index
    %c0_63 = arith.constant 0 : index
    %118 = vector.load %arg15[%c0_61, %c0_62, %c0_63] : memref<2x18x128xf32, #tpu.memory_space<vmem>>, vector<2x1x128xf32>
    tpu.vector_store %arg15[%c0_61, %c0_62, %c0_63], %117 {strides = array<i32>} : memref<2x18x128xf32, #tpu.memory_space<vmem>>, vector<2x1x128xf32>,
    %c0_64 = arith.constant 0 : index
    %c17_65 = arith.constant 17 : index
    %c0_66 = arith.constant 0 : index
    %119 = vector.load %arg15[%c0_64, %c17_65, %c0_66] : memref<2x18x128xf32, #tpu.memory_space<vmem>>, vector<2x1x128xf32>
    tpu.vector_store %arg15[%c0_64, %c17_65, %c0_66], %117 {strides = array<i32>} : memref<2x18x128xf32, #tpu.memory_space<vmem>>, vector<2x1x128xf32>,
    %c0_67 = arith.constant 0 : index
    %c1_68 = arith.constant 1 : index
    %c0_69 = arith.constant 0 : index
    %120 = vector.load %arg15[%c0_67, %c1_68, %c0_69] : memref<2x18x128xf32, #tpu.memory_space<vmem>>, vector<2x16x128xf32>
    tpu.vector_store %arg15[%c0_67, %c1_68, %c0_69], %116 {strides = array<i32>} : memref<2x18x128xf32, #tpu.memory_space<vmem>>, vector<2x16x128xf32>,
    %c0_70 = arith.constant 0 : index
    %c0_71 = arith.constant 0 : index
    %c0_72 = arith.constant 0 : index
    %121 = vector.load %arg15[%c0_70, %c0_71, %c0_72] : memref<2x18x128xf32, #tpu.memory_space<vmem>>, vector<2x16x128xf32>
    %cst_73 = arith.constant 0.000000e+00 : f32
    %122 = vector.broadcast %cst_73 : f32 to vector<2x16x8xf32>
    %123 = vector.extract_strided_slice %121 {offsets = [0, 0, 0], sizes = [2, 16, 120], strides = [1, 1, 1]} : vector<2x16x128xf32> to vector<2x16x120xf32>
    %124 = tpu.concatenate %122, %123 in 2 : vector<2x16x8xf32>, vector<2x16x120xf32> -> vector<2x16x128xf32>
    %cst_74 = arith.constant 0.000000e+00 : f32
    %125 = vector.broadcast %cst_74 : f32 to vector<2x16x8xf32>
    %126 = vector.extract_strided_slice %121 {offsets = [0, 0, 8], sizes = [2, 16, 120], strides = [1, 1, 1]} : vector<2x16x128xf32> to vector<2x16x120xf32>
    %127 = tpu.concatenate %126, %125 in 2 : vector<2x16x120xf32>, vector<2x16x8xf32> -> vector<2x16x128xf32>
    %c0_75 = arith.constant 0 : index
    %c1_76 = arith.constant 1 : index
    %c0_77 = arith.constant 0 : index
    %128 = vector.load %arg15[%c0_75, %c1_76, %c0_77] : memref<2x18x128xf32, #tpu.memory_space<vmem>>, vector<2x16x128xf32>
    %cst_78 = arith.constant 0.000000e+00 : f32
    %129 = vector.broadcast %cst_78 : f32 to vector<2x16x8xf32>
    %130 = vector.extract_strided_slice %128 {offsets = [0, 0, 0], sizes = [2, 16, 120], strides = [1, 1, 1]} : vector<2x16x128xf32> to vector<2x16x120xf32>
    %131 = tpu.concatenate %129, %130 in 2 : vector<2x16x8xf32>, vector<2x16x120xf32> -> vector<2x16x128xf32>
    %cst_79 = arith.constant 0.000000e+00 : f32
    %132 = vector.broadcast %cst_79 : f32 to vector<2x16x8xf32>
    %133 = vector.extract_strided_slice %128 {offsets = [0, 0, 8], sizes = [2, 16, 120], strides = [1, 1, 1]} : vector<2x16x128xf32> to vector<2x16x120xf32>
    %134 = tpu.concatenate %133, %132 in 2 : vector<2x16x120xf32>, vector<2x16x8xf32> -> vector<2x16x128xf32>
    %c0_80 = arith.constant 0 : index
    %c2_81 = arith.constant 2 : index
    %c0_82 = arith.constant 0 : index
    %135 = vector.load %arg15[%c0_80, %c2_81, %c0_82] : memref<2x18x128xf32, #tpu.memory_space<vmem>>, vector<2x16x128xf32>
    %cst_83 = arith.constant 0.000000e+00 : f32
    %136 = vector.broadcast %cst_83 : f32 to vector<2x16x8xf32>
    %137 = vector.extract_strided_slice %135 {offsets = [0, 0, 0], sizes = [2, 16, 120], strides = [1, 1, 1]} : vector<2x16x128xf32> to vector<2x16x120xf32>
    %138 = tpu.concatenate %136, %137 in 2 : vector<2x16x8xf32>, vector<2x16x120xf32> -> vector<2x16x128xf32>
    %cst_84 = arith.constant 0.000000e+00 : f32
    %139 = vector.broadcast %cst_84 : f32 to vector<2x16x8xf32>
    %140 = vector.extract_strided_slice %135 {offsets = [0, 0, 8], sizes = [2, 16, 120], strides = [1, 1, 1]} : vector<2x16x128xf32> to vector<2x16x120xf32>
    %141 = tpu.concatenate %140, %139 in 2 : vector<2x16x120xf32>, vector<2x16x8xf32> -> vector<2x16x128xf32>
    %142 = tpu.concatenate %124, %121, %127, %131, %128, %134, %138, %135, %141 in 2 : vector<2x16x128xf32>, vector<2x16x128xf32>, vector<2x16x128xf32>, vector<2x16x128xf32>, vector<2x16x128xf32>, vector<2x16x128xf32>, vector<2x16x128xf32>, vector<2x16x128xf32>, vector<2x16x128xf32> -> vector<2x16x1152xf32>
    %143 = tpu.concatenate %142, %0 in 2 : vector<2x16x1152xf32>, vector<2x16x64xf32> -> vector<2x16x1216xf32>
    %144 = vector.shape_cast %143 : vector<2x16x1216xf32> to vector<32x1216xf32>
    %145 = arith.truncf %144 : vector<32x1216xf32> to vector<32x1216xbf16>
    %c0_85 = arith.constant 0 : index
    %c0_86 = arith.constant 0 : index
    %146 = vector.load %arg7[%c0_85, %c0_86] : memref<1216x128xbf16, #tpu.memory_space<vmem>>, vector<1216x128xbf16>
    %cst_87 = arith.constant dense<0.000000e+00> : vector<32x128xf32>
    %147 = tpu.matmul %145, %146, %cst_87 {dimension_numbers = #tpu.dot_dimension_numbers<[1], [0], [0], [1], [0, 0, 1, 1], [], []>} : vector<32x1216xbf16>, vector<1216x128xbf16>, vector<32x128xf32> -> vector<32x128xf32>
    %c0_88 = arith.constant 0 : index
    %c0_89 = arith.constant 0 : index
    %148 = vector.load %arg8[%c0_88, %c0_89] : memref<1x128xf32, #tpu.memory_space<vmem>>, vector<1x128xf32>
    %149 = vector.broadcast %148 : vector<1x128xf32> to vector<32x128xf32>
    %150 = arith.addf %147, %149 : vector<32x128xf32>
    %c0_90 = arith.constant 0 : index
    %c0_91 = arith.constant 0 : index
    %151 = vector.load %arg13[%c0_90, %c0_91] : memref<32x128xf32, #tpu.memory_space<vmem>>, vector<32x128xf32>
    tpu.vector_store %arg13[%c0_90, %c0_91], %150 {strides = array<i32>} : memref<32x128xf32, #tpu.memory_space<vmem>>, vector<32x128xf32>,
    return
  }
}

</mosaic_0001>

<llo_original>
// kernel: tile.39
$region0: #{tile.39}
  %s0 = inlined_call_operand.vmem [shape: f32[16,8,8], index: 0, kind: input, shape index: {}]
  %s1 = inlined_call_operand.vmem [shape: f32[128,8], index: 1, kind: output, shape index: {}]
  %s2 = smov 3
  %v3 = vld [vmem:[%s0] ss:$16 sm:%s2]
  %s4 = smov 12
  %v5 = vld [vmem:[%s0] ss:$16 sm:%s4]
  %vm6 = vcmask 1043458
  %v7 = vsel %vm6, %v5, %v3
  %s8 = smov 48
  %v9 = vld [vmem:[%s0] ss:$16 sm:%s8]
  %vm10 = vcmask 1045508
  %v11 = vsel %vm10, %v9, %v7
  %s12 = smov 192
  %v13 = vld [vmem:[%s0] ss:$16 sm:%s12]
  %vm14 = vcmask 1047558
  %v15 = vsel %vm14, %v13, %v11
  %vm16 = vcmask 64512
  %17 = vst.msk [vmem:[%s1] sm:$0xff] %vm16, %v15
  %s18 = scalar_lea.vmem %s0, 15
  %s19 = smov 3
  %v20 = vld [vmem:[%s18] ss:$16 sm:%s19]
  %s21 = scalar_lea.vmem %s0, 15
  %s22 = smov 12
  %v23 = vld [vmem:[%s21] ss:$16 sm:%s22]
  %vm24 = vcmask 1043458
  %v25 = vsel %vm24, %v23, %v20
  %s26 = scalar_lea.vmem %s0, 15
  %s27 = smov 48
  %v28 = vld [vmem:[%s26] ss:$16 sm:%s27]
  %vm29 = vcmask 1045508
  %v30 = vsel %vm29, %v28, %v25
  %s31 = scalar_lea.vmem %s0, 15
  %s32 = smov 192
  %v33 = vld [vmem:[%s31] ss:$16 sm:%s32]
  %vm34 = vcmask 1047558
  %v35 = vsel %vm34, %v33, %v30
  %36 = vrot.lane.b32.xlu0 %v35, 120
  %v37 = vpop.permute.xlu0 %36
  %vm38 = vcmask 1048512
  %39 = vst.msk [vmem:[%s1] sm:$0xff] %vm38, %v37
  %s40 = scalar_lea.vmem %s0, 14
  %s41 = smov 3
  %v42 = vld [vmem:[%s40] ss:$16 sm:%s41]
  %s43 = scalar_lea.vmem %s0, 14
  %s44 = smov 12
  %v45 = vld [vmem:[%s43] ss:$16 sm:%s44]
  %vm46 = vcmask 1043458
  %v47 = vsel %vm46, %v45, %v42
  %s48 = scalar_lea.vmem %s0, 14
  %s49 = smov 48
  %v50 = vld [vmem:[%s48] ss:$16 sm:%s49]
  %vm51 = vcmask 1045508
  %v52 = vsel %vm51, %v50, %v47
  %s53 = scalar_lea.vmem %s0, 14
  %s54 = smov 192
  %v55 = vld [vmem:[%s53] ss:$16 sm:%s54]
  %vm56 = vcmask 1047558
  %v57 = vsel %vm56, %v55, %v52
  %58 = vrot.lane.b32.xlu0 %v57, 112
  %v59 = vpop.permute.xlu0 %58
  %vm60 = vcmask 982912
  %61 = vst.msk [vmem:[%s1] sm:$0xff] %vm60, %v59
  %s62 = scalar_lea.vmem %s0, 13
  %s63 = smov 3
  %v64 = vld [vmem:[%s62] ss:$16 sm:%s63]
  %s65 = scalar_lea.vmem %s0, 13
  %s66 = smov 12
  %v67 = vld [vmem:[%s65] ss:$16 sm:%s66]
  %vm68 = vcmask 1043458
  %v69 = vsel %vm68, %v67, %v64
  %s70 = scalar_lea.vmem %s0, 13
  %s71 = smov 48
  %v72 = vld [vmem:[%s70] ss:$16 sm:%s71]
  %vm73 = vcmask 1045508
  %v74 = vsel %vm73, %v72, %v69
  %s75 = scalar_lea.vmem %s0, 13
  %s76 = smov 192
  %v77 = vld [vmem:[%s75] ss:$16 sm:%s76]
  %vm78 = vcmask 1047558
  %v79 = vsel %vm78, %v77, %v74
  %80 = vrot.lane.b32.xlu0 %v79, 104
  %v81 = vpop.permute.xlu0 %80
  %vm82 = vcmask 917312
  %83 = vst.msk [vmem:[%s1] sm:$0xff] %vm82, %v81
  %s84 = scalar_lea.vmem %s0, 12
  %s85 = smov 3
  %v86 = vld [vmem:[%s84] ss:$16 sm:%s85]
  %s87 = scalar_lea.vmem %s0, 12
  %s88 = smov 12
  %v89 = vld [vmem:[%s87] ss:$16 sm:%s88]
  %vm90 = vcmask 1043458
  %v91 = vsel %vm90, %v89, %v86
  %s92 = scalar_lea.vmem %s0, 12
  %s93 = smov 48
  %v94 = vld [vmem:[%s92] ss:$16 sm:%s93]
  %vm95 = vcmask 1045508
  %v96 = vsel %vm95, %v94, %v91
  %s97 = scalar_lea.vmem %s0, 12
  %s98 = smov 192
  %v99 = vld [vmem:[%s97] ss:$16 sm:%s98]
  %vm100 = vcmask 1047558
  %v101 = vsel %vm100, %v99, %v96
  %102 = vrot.lane.b32.xlu0 %v101, 96
  %v103 = vpop.permute.xlu0 %102
  %vm104 = vcmask 851712
  %105 = vst.msk [vmem:[%s1] sm:$0xff] %vm104, %v103
  %s106 = scalar_lea.vmem %s0, 11
  %s107 = smov 3
  %v108 = vld [vmem:[%s106] ss:$16 sm:%s107]
  %s109 = scalar_lea.vmem %s0, 11
  %s110 = smov 12
  %v111 = vld [vmem:[%s109] ss:$16 sm:%s110]
  %vm112 = vcmask 1043458
  %v113 = vsel %vm112, %v111, %v108
  %s114 = scalar_lea.vmem %s0, 11
  %s115 = smov 48
  %v116 = vld [vmem:[%s114] ss:$16 sm:%s115]
  %vm117 = vcmask 1045508
  %v118 = vsel %vm117, %v116, %v113
  %s119 = scalar_lea.vmem %s0, 11
  %s120 = smov 192
  %v121 = vld [vmem:[%s119] ss:$16 sm:%s120]
  %vm122 = vcmask 1047558
  %v123 = vsel %vm122, %v121, %v118
  %124 = vrot.lane.b32.xlu0 %v123, 88
  %v125 = vpop.permute.xlu0 %124
  %vm126 = vcmask 786112
  %127 = vst.msk [vmem:[%s1] sm:$0xff] %vm126, %v125
  %s128 = scalar_lea.vmem %s0, 10
  %s129 = smov 3
  %v130 = vld [vmem:[%s128] ss:$16 sm:%s129]
  %s131 = scalar_lea.vmem %s0, 10
  %s132 = smov 12
  %v133 = vld [vmem:[%s131] ss:$16 sm:%s132]
  %vm134 = vcmask 1043458
  %v135 = vsel %vm134, %v133, %v130
  %s136 = scalar_lea.vmem %s0, 10
  %s137 = smov 48
  %v138 = vld [vmem:[%s136] ss:$16 sm:%s137]
  %vm139 = vcmask 1045508
  %v140 = vsel %vm139, %v138, %v135
  %s141 = scalar_lea.vmem %s0, 10
  %s142 = smov 192
  %v143 = vld [vmem:[%s141] ss:$16 sm:%s142]
  %vm144 = vcmask 1047558
  %v145 = vsel %vm144, %v143, %v140
  %146 = vrot.lane.b32.xlu0 %v145, 80
  %v147 = vpop.permute.xlu0 %146
  %vm148 = vcmask 720512
  %149 = vst.msk [vmem:[%s1] sm:$0xff] %vm148, %v147
  %s150 = scalar_lea.vmem %s0, 9
  %s151 = smov 3
  %v152 = vld [vmem:[%s150] ss:$16 sm:%s151]
  %s153 = scalar_lea.vmem %s0, 9
  %s154 = smov 12
  %v155 = vld [vmem:[%s153] ss:$16 sm:%s154]
  %vm156 = vcmask 1043458
  %v157 = vsel %vm156, %v155, %v152
  %s158 = scalar_lea.vmem %s0, 9
  %s159 = smov 48
  %v160 = vld [vmem:[%s158] ss:$16 sm:%s159]
  %vm161 = vcmask 1045508
  %v162 = vsel %vm161, %v160, %v157
  %s163 = scalar_lea.vmem %s0, 9
  %s164 = smov 192
  %v165 = vld [vmem:[%s163] ss:$16 sm:%s164]
  %vm166 = vcmask 1047558
  %v167 = vsel %vm166, %v165, %v162
  %168 = vrot.lane.b32.xlu0 %v167, 72
  %v169 = vpop.permute.xlu0 %168
  %vm170 = vcmask 654912
  %171 = vst.msk [vmem:[%s1] sm:$0xff] %vm170, %v169
  %s172 = scalar_lea.vmem %s0, 8
  %s173 = smov 3
  %v174 = vld [vmem:[%s172] ss:$16 sm:%s173]
  %s175 = scalar_lea.vmem %s0, 8
  %s176 = smov 12
  %v177 = vld [vmem:[%s175] ss:$16 sm:%s176]
  %vm178 = vcmask 1043458
  %v179 = vsel %vm178, %v177, %v174
  %s180 = scalar_lea.vmem %s0, 8
  %s181 = smov 48
  %v182 = vld [vmem:[%s180] ss:$16 sm:%s181]
  %vm183 = vcmask 1045508
  %v184 = vsel %vm183, %v182, %v179
  %s185 = scalar_lea.vmem %s0, 8
  %s186 = smov 192
  %v187 = vld [vmem:[%s185] ss:$16 sm:%s186]
  %vm188 = vcmask 1047558
  %v189 = vsel %vm188, %v187, %v184
  %190 = vrot.lane.b32.xlu0 %v189, 64
  %v191 = vpop.permute.xlu0 %190
  %vm192 = vcmask 589312
  %193 = vst.msk [vmem:[%s1] sm:$0xff] %vm192, %v191
  %s194 = scalar_lea.vmem %s0, 7
  %s195 = smov 3
  %v196 = vld [vmem:[%s194] ss:$16 sm:%s195]
  %s197 = scalar_lea.vmem %s0, 7
  %s198 = smov 12
  %v199 = vld [vmem:[%s197] ss:$16 sm:%s198]
  %vm200 = vcmask 1043458
  %v201 = vsel %vm200, %v199, %v196
  %s202 = scalar_lea.vmem %s0, 7
  %s203 = smov 48
  %v204 = vld [vmem:[%s202] ss:$16 sm:%s203]
  %vm205 = vcmask 1045508
  %v206 = vsel %vm205, %v204, %v201
  %s207 = scalar_lea.vmem %s0, 7
  %s208 = smov 192
  %v209 = vld [vmem:[%s207] ss:$16 sm:%s208]
  %vm210 = vcmask 1047558
  %v211 = vsel %vm210, %v209, %v206
  %212 = vrot.lane.b32.xlu0 %v211, 56
  %v213 = vpop.permute.xlu0 %212
  %vm214 = vcmask 523712
  %215 = vst.msk [vmem:[%s1] sm:$0xff] %vm214, %v213
  %s216 = scalar_lea.vmem %s0, 6
  %s217 = smov 3
  %v218 = vld [vmem:[%s216] ss:$16 sm:%s217]
  %s219 = scalar_lea.vmem %s0, 6
  %s220 = smov 12
  %v221 = vld [vmem:[%s219] ss:$16 sm:%s220]
  %vm222 = vcmask 1043458
  %v223 = vsel %vm222, %v221, %v218
  %s224 = scalar_lea.vmem %s0, 6
  %s225 = smov 48
  %v226 = vld [vmem:[%s224] ss:$16 sm:%s225]
  %vm227 = vcmask 1045508
  %v228 = vsel %vm227, %v226, %v223
  %s229 = scalar_lea.vmem %s0, 6
  %s230 = smov 192
  %v231 = vld [vmem:[%s229] ss:$16 sm:%s230]
  %vm232 = vcmask 1047558
  %v233 = vsel %vm232, %v231, %v228
  %234 = vrot.lane.b32.xlu0 %v233, 48
  %v235 = vpop.permute.xlu0 %234
  %vm236 = vcmask 458112
  %237 = vst.msk [vmem:[%s1] sm:$0xff] %vm236, %v235
  %s238 = scalar_lea.vmem %s0, 5
  %s239 = smov 3
  %v240 = vld [vmem:[%s238] ss:$16 sm:%s239]
  %s241 = scalar_lea.vmem %s0, 5
  %s242 = smov 12
  %v243 = vld [vmem:[%s241] ss:$16 sm:%s242]
  %vm244 = vcmask 1043458
  %v245 = vsel %vm244, %v243, %v240
  %s246 = scalar_lea.vmem %s0, 5
  %s247 = smov 48
  %v248 = vld [vmem:[%s246] ss:$16 sm:%s247]
  %vm249 = vcmask 1045508
  %v250 = vsel %vm249, %v248, %v245
  %s251 = scalar_lea.vmem %s0, 5
  %s252 = smov 192
  %v253 = vld [vmem:[%s251] ss:$16 sm:%s252]
  %vm254 = vcmask 1047558
  %v255 = vsel %vm254, %v253, %v250
  %256 = vrot.lane.b32.xlu0 %v255, 40
  %v257 = vpop.permute.xlu0 %256
  %vm258 = vcmask 392512
  %259 = vst.msk [vmem:[%s1] sm:$0xff] %vm258, %v257
  %s260 = scalar_lea.vmem %s0, 4
  %s261 = smov 3
  %v262 = vld [vmem:[%s260] ss:$16 sm:%s261]
  %s263 = scalar_lea.vmem %s0, 4
  %s264 = smov 12
  %v265 = vld [vmem:[%s263] ss:$16 sm:%s264]
  %vm266 = vcmask 1043458
  %v267 = vsel %vm266, %v265, %v262
  %s268 = scalar_lea.vmem %s0, 4
  %s269 = smov 48
  %v270 = vld [vmem:[%s268] ss:$16 sm:%s269]
  %vm271 = vcmask 1045508
  %v272 = vsel %vm271, %v270, %v267
  %s273 = scalar_lea.vmem %s0, 4
  %s274 = smov 192
  %v275 = vld [vmem:[%s273] ss:$16 sm:%s274]
  %vm276 = vcmask 1047558
  %v277 = vsel %vm276, %v275, %v272
  %278 = vrot.lane.b32.xlu0 %v277, 32
  %v279 = vpop.permute.xlu0 %278
  %vm280 = vcmask 326912
  %281 = vst.msk [vmem:[%s1] sm:$0xff] %vm280, %v279
  %s282 = scalar_lea.vmem %s0, 3
  %s283 = smov 3
  %v284 = vld [vmem:[%s282] ss:$16 sm:%s283]
  %s285 = scalar_lea.vmem %s0, 3
  %s286 = smov 12
  %v287 = vld [vmem:[%s285] ss:$16 sm:%s286]
  %vm288 = vcmask 1043458
  %v289 = vsel %vm288, %v287, %v284
  %s290 = scalar_lea.vmem %s0, 3
  %s291 = smov 48
  %v292 = vld [vmem:[%s290] ss:$16 sm:%s291]
  %vm293 = vcmask 1045508
  %v294 = vsel %vm293, %v292, %v289
  %s295 = scalar_lea.vmem %s0, 3
  %s296 = smov 192
  %v297 = vld [vmem:[%s295] ss:$16 sm:%s296]
  %vm298 = vcmask 1047558
  %v299 = vsel %vm298, %v297, %v294
  %300 = vrot.lane.b32.xlu0 %v299, 24
  %v301 = vpop.permute.xlu0 %300
  %vm302 = vcmask 261312
  %303 = vst.msk [vmem:[%s1] sm:$0xff] %vm302, %v301
  %s304 = scalar_lea.vmem %s0, 2
  %s305 = smov 3
  %v306 = vld [vmem:[%s304] ss:$16 sm:%s305]
  %s307 = scalar_lea.vmem %s0, 2
  %s308 = smov 12
  %v309 = vld [vmem:[%s307] ss:$16 sm:%s308]
  %vm310 = vcmask 1043458
  %v311 = vsel %vm310, %v309, %v306
  %s312 = scalar_lea.vmem %s0, 2
  %s313 = smov 48
  %v314 = vld [vmem:[%s312] ss:$16 sm:%s313]
  %vm315 = vcmask 1045508
  %v316 = vsel %vm315, %v314, %v311
  %s317 = scalar_lea.vmem %s0, 2
  %s318 = smov 192
  %v319 = vld [vmem:[%s317] ss:$16 sm:%s318]
  %vm320 = vcmask 1047558
  %v321 = vsel %vm320, %v319, %v316
  %322 = vrot.lane.b32.xlu0 %v321, 16
  %v323 = vpop.permute.xlu0 %322
  %vm324 = vcmask 195712
  %325 = vst.msk [vmem:[%s1] sm:$0xff] %vm324, %v323
  %s326 = scalar_lea.vmem %s0, 1
  %s327 = smov 3
  %v328 = vld [vmem:[%s326] ss:$16 sm:%s327]
  %s329 = scalar_lea.vmem %s0, 1
  %s330 = smov 12
  %v331 = vld [vmem:[%s329] ss:$16 sm:%s330]
  %vm332 = vcmask 1043458
  %v333 = vsel %vm332, %v331, %v328
  %s334 = scalar_lea.vmem %s0, 1
  %s335 = smov 48
  %v336 = vld [vmem:[%s334] ss:$16 sm:%s335]
  %vm337 = vcmask 1045508
  %v338 = vsel %vm337, %v336, %v333
  %s339 = scalar_lea.vmem %s0, 1
  %s340 = smov 192
  %v341 = vld [vmem:[%s339] ss:$16 sm:%s340]
  %vm342 = vcmask 1047558
  %v343 = vsel %vm342, %v341, %v338
  %344 = vrot.lane.b32.xlu0 %v343, 8
  %v345 = vpop.permute.xlu0 %344
  %vm346 = vcmask 130112
  %347 = vst.msk [vmem:[%s1] sm:$0xff] %vm346, %v345

// kernel: tile.34
$region0: #{tile.34}
  %s0 = inlined_call_operand.vmem [shape: f32[16,4,4], index: 0, kind: input, shape index: {}]
  %s1 = inlined_call_operand.vmem [shape: f32[64,4], index: 1, kind: output, shape index: {}]
  $region1: #{tile.34} parent=0
    #allocation0 [shape = 'u8[4096]{0}', space=vmem, size = 0x1000, scoped, tag = 'scoped mem for output reshape']
    %s2 = smov 3
    %v3 = vld [vmem:[%s0] ss:$16 sm:%s2]
    %s4 = smov 12
    %v5 = vld [vmem:[%s0] ss:$16 sm:%s4]
    %vm6 = vcmask 1043458
    %v7 = vsel %vm6, %v5, %v3
    %vm8 = vcmask 31744
    %9 = vst.msk [vmem:[#allocation0] sm:$0xf] %vm8, %v7
    %s10 = scalar_lea.vmem %s0, 15
    %s11 = smov 3
    %v12 = vld [vmem:[%s10] ss:$16 sm:%s11]
    %s13 = scalar_lea.vmem %s0, 15
    %s14 = smov 12
    %v15 = vld [vmem:[%s13] ss:$16 sm:%s14]
    %vm16 = vcmask 1043458
    %v17 = vsel %vm16, %v15, %v12
    %18 = vrot.lane.b32.xlu0 %v17, 60
    %v19 = vpop.permute.xlu0 %18
    %vm20 = vcmask 523744
    %21 = vst.msk [vmem:[#allocation0] sm:$0xf] %vm20, %v19
    %s22 = scalar_lea.vmem %s0, 14
    %s23 = smov 3
    %v24 = vld [vmem:[%s22] ss:$16 sm:%s23]
    %s25 = scalar_lea.vmem %s0, 14
    %s26 = smov 12
    %v27 = vld [vmem:[%s25] ss:$16 sm:%s26]
    %vm28 = vcmask 1043458
    %v29 = vsel %vm28, %v27, %v24
    %30 = vrot.lane.b32.xlu0 %v29, 56
    %v31 = vpop.permute.xlu0 %30
    %vm32 = vcmask 490944
    %33 = vst.msk [vmem:[#allocation0] sm:$0xf] %vm32, %v31
    %s34 = scalar_lea.vmem %s0, 13
    %s35 = smov 3
    %v36 = vld [vmem:[%s34] ss:$16 sm:%s35]
    %s37 = scalar_lea.vmem %s0, 13
    %s38 = smov 12
    %v39 = vld [vmem:[%s37] ss:$16 sm:%s38]
    %vm40 = vcmask 1043458
    %v41 = vsel %vm40, %v39, %v36
    %42 = vrot.lane.b32.xlu0 %v41, 52
    %v43 = vpop.permute.xlu0 %42
    %vm44 = vcmask 458144
    %45 = vst.msk [vmem:[#allocation0] sm:$0xf] %vm44, %v43
    %s46 = scalar_lea.vmem %s0, 12
    %s47 = smov 3
    %v48 = vld [vmem:[%s46] ss:$16 sm:%s47]
    %s49 = scalar_lea.vmem %s0, 12
    %s50 = smov 12
    %v51 = vld [vmem:[%s49] ss:$16 sm:%s50]
    %vm52 = vcmask 1043458
    %v53 = vsel %vm52, %v51, %v48
    %54 = vrot.lane.b32.xlu0 %v53, 48
    %v55 = vpop.permute.xlu0 %54
    %vm56 = vcmask 425344
    %57 = vst.msk [vmem:[#allocation0] sm:$0xf] %vm56, %v55
    %s58 = scalar_lea.vmem %s0, 11
    %s59 = smov 3
    %v60 = vld [vmem:[%s58] ss:$16 sm:%s59]
    %s61 = scalar_lea.vmem %s0, 11
    %s62 = smov 12
    %v63 = vld [vmem:[%s61] ss:$16 sm:%s62]
    %vm64 = vcmask 1043458
    %v65 = vsel %vm64, %v63, %v60
    %66 = vrot.lane.b32.xlu0 %v65, 44
    %v67 = vpop.permute.xlu0 %66
    %vm68 = vcmask 392544
    %69 = vst.msk [vmem:[#allocation0] sm:$0xf] %vm68, %v67
    %s70 = scalar_lea.vmem %s0, 10
    %s71 = smov 3
    %v72 = vld [vmem:[%s70] ss:$16 sm:%s71]
    %s73 = scalar_lea.vmem %s0, 10
    %s74 = smov 12
    %v75 = vld [vmem:[%s73] ss:$16 sm:%s74]
    %vm76 = vcmask 1043458
    %v77 = vsel %vm76, %v75, %v72
    %78 = vrot.lane.b32.xlu0 %v77, 40
    %v79 = vpop.permute.xlu0 %78
    %vm80 = vcmask 359744
    %81 = vst.msk [vmem:[#allocation0] sm:$0xf] %vm80, %v79
    %s82 = scalar_lea.vmem %s0, 9
    %s83 = smov 3
    %v84 = vld [vmem:[%s82] ss:$16 sm:%s83]
    %s85 = scalar_lea.vmem %s0, 9
    %s86 = smov 12
    %v87 = vld [vmem:[%s85] ss:$16 sm:%s86]
    %vm88 = vcmask 1043458
    %v89 = vsel %vm88, %v87, %v84
    %90 = vrot.lane.b32.xlu0 %v89, 36
    %v91 = vpop.permute.xlu0 %90
    %vm92 = vcmask 326944
    %93 = vst.msk [vmem:[#allocation0] sm:$0xf] %vm92, %v91
    %s94 = scalar_lea.vmem %s0, 8
    %s95 = smov 3
    %v96 = vld [vmem:[%s94] ss:$16 sm:%s95]
    %s97 = scalar_lea.vmem %s0, 8
    %s98 = smov 12
    %v99 = vld [vmem:[%s97] ss:$16 sm:%s98]
    %vm100 = vcmask 1043458
    %v101 = vsel %vm100, %v99, %v96
    %102 = vrot.lane.b32.xlu0 %v101, 32
    %v103 = vpop.permute.xlu0 %102
    %vm104 = vcmask 294144
    %105 = vst.msk [vmem:[#allocation0] sm:$0xf] %vm104, %v103
    %s106 = scalar_lea.vmem %s0, 7
    %s107 = smov 3
    %v108 = vld [vmem:[%s106] ss:$16 sm:%s107]
    %s109 = scalar_lea.vmem %s0, 7
    %s110 = smov 12
    %v111 = vld [vmem:[%s109] ss:$16 sm:%s110]
    %vm112 = vcmask 1043458
    %v113 = vsel %vm112, %v111, %v108
    %114 = vrot.lane.b32.xlu0 %v113, 28
    %v115 = vpop.permute.xlu0 %114
    %vm116 = vcmask 261344
    %117 = vst.msk [vmem:[#allocation0] sm:$0xf] %vm116, %v115
    %s118 = scalar_lea.vmem %s0, 6
    %s119 = smov 3
    %v120 = vld [vmem:[%s118] ss:$16 sm:%s119]
    %s121 = scalar_lea.vmem %s0, 6
    %s122 = smov 12
    %v123 = vld [vmem:[%s121] ss:$16 sm:%s122]
    %vm124 = vcmask 1043458
    %v125 = vsel %vm124, %v123, %v120
    %126 = vrot.lane.b32.xlu0 %v125, 24
    %v127 = vpop.permute.xlu0 %126
    %vm128 = vcmask 228544
    %129 = vst.msk [vmem:[#allocation0] sm:$0xf] %vm128, %v127
    %s130 = scalar_lea.vmem %s0, 5
    %s131 = smov 3
    %v132 = vld [vmem:[%s130] ss:$16 sm:%s131]
    %s133 = scalar_lea.vmem %s0, 5
    %s134 = smov 12
    %v135 = vld [vmem:[%s133] ss:$16 sm:%s134]
    %vm136 = vcmask 1043458
    %v137 = vsel %vm136, %v135, %v132
    %138 = vrot.lane.b32.xlu0 %v137, 20
    %v139 = vpop.permute.xlu0 %138
    %vm140 = vcmask 195744
    %141 = vst.msk [vmem:[#allocation0] sm:$0xf] %vm140, %v139
    %s142 = scalar_lea.vmem %s0, 4
    %s143 = smov 3
    %v144 = vld [vmem:[%s142] ss:$16 sm:%s143]
    %s145 = scalar_lea.vmem %s0, 4
    %s146 = smov 12
    %v147 = vld [vmem:[%s145] ss:$16 sm:%s146]
    %vm148 = vcmask 1043458
    %v149 = vsel %vm148, %v147, %v144
    %150 = vrot.lane.b32.xlu0 %v149, 16
    %v151 = vpop.permute.xlu0 %150
    %vm152 = vcmask 162944
    %153 = vst.msk [vmem:[#allocation0] sm:$0xf] %vm152, %v151
    %s154 = scalar_lea.vmem %s0, 3
    %s155 = smov 3
    %v156 = vld [vmem:[%s154] ss:$16 sm:%s155]
    %s157 = scalar_lea.vmem %s0, 3
    %s158 = smov 12
    %v159 = vld [vmem:[%s157] ss:$16 sm:%s158]
    %vm160 = vcmask 1043458
    %v161 = vsel %vm160, %v159, %v156
    %162 = vrot.lane.b32.xlu0 %v161, 12
    %v163 = vpop.permute.xlu0 %162
    %vm164 = vcmask 130144
    %165 = vst.msk [vmem:[#allocation0] sm:$0xf] %vm164, %v163
    %s166 = scalar_lea.vmem %s0, 2
    %s167 = smov 3
    %v168 = vld [vmem:[%s166] ss:$16 sm:%s167]
    %s169 = scalar_lea.vmem %s0, 2
    %s170 = smov 12
    %v171 = vld [vmem:[%s169] ss:$16 sm:%s170]
    %vm172 = vcmask 1043458
    %v173 = vsel %vm172, %v171, %v168
    %174 = vrot.lane.b32.xlu0 %v173, 8
    %v175 = vpop.permute.xlu0 %174
    %vm176 = vcmask 97344
    %177 = vst.msk [vmem:[#allocation0] sm:$0xf] %vm176, %v175
    %s178 = scalar_lea.vmem %s0, 1
    %s179 = smov 3
    %v180 = vld [vmem:[%s178] ss:$16 sm:%s179]
    %s181 = scalar_lea.vmem %s0, 1
    %s182 = smov 12
    %v183 = vld [vmem:[%s181] ss:$16 sm:%s182]
    %vm184 = vcmask 1043458
    %v185 = vsel %vm184, %v183, %v180
    %186 = vrot.lane.b32.xlu0 %v185, 4
    %v187 = vpop.permute.xlu0 %186
    %vm188 = vcmask 64544
    %189 = vst.msk [vmem:[#allocation0] sm:$0xf] %vm188, %v187
    %s191 = sshll.u32 1, 4
    %s192 = ssub.s32 %s191, 1
    %v194 = vld [vmem:[#allocation0] sm:%s192]
    %s195 = sshll.u32 1, 4
    %s196 = ssub.s32 %s195, 1
    %197 = vst [vmem:[%s1] sm:%s196] %v194

// kernel: rcb_forward.1
$region0: #{rcb_forward.1}
  #allocation0 [shape = 'u32[]', space=smem, size = 0x4, offset = 0x4, fixed_abs, tag = 'smem constant byte address 0x4 - core index']
  #allocation1 [shape = 'u32[144,128]{1,0:T(1,128)}', space=vmem, size = 0x12000, scoped, tag = 'internal scratch']
  #allocation2 [shape = 'f32[2,18,64]{2,1,0:T(8,128)}', space=vmem, size = 0x6000, scoped, tag = 'scratch operand']
  #allocation3 [shape = 'f32[2,18,128]{2,1,0:T(8,128)}', space=vmem, size = 0x6000, scoped, tag = 'scratch operand']
  %s0 = inlined_call_operand.vmem [shape: f32[2,16,64], index: 0, kind: input, shape index: {}]
  %s1 = inlined_call_operand.vmem [shape: f32[1,4], index: 1, kind: input, shape index: {}]
  %s2 = inlined_call_operand.vmem [shape: f32[1,4], index: 2, kind: input, shape index: {}]
  %s3 = inlined_call_operand.vmem [shape: bf16[576,128], index: 3, kind: input, shape index: {}]
  %s4 = inlined_call_operand.vmem [shape: f32[1,128], index: 4, kind: input, shape index: {}]
  %s5 = inlined_call_operand.vmem [shape: f32[1,8], index: 5, kind: input, shape index: {}]
  %s6 = inlined_call_operand.vmem [shape: f32[1,8], index: 6, kind: input, shape index: {}]
  %s7 = inlined_call_operand.vmem [shape: bf16[1216,128], index: 7, kind: input, shape index: {}]
  %s8 = inlined_call_operand.vmem [shape: f32[1,128], index: 8, kind: input, shape index: {}]
  %s9 = inlined_call_operand.vmem [shape: f32[64,4], index: 9, kind: input, shape index: {}]
  %s10 = inlined_call_operand.vmem [shape: f32[4,64], index: 10, kind: input, shape index: {}]
  %s11 = inlined_call_operand.vmem [shape: f32[128,8], index: 11, kind: input, shape index: {}]
  %s12 = inlined_call_operand.vmem [shape: f32[8,128], index: 12, kind: input, shape index: {}]
  %s13 = inlined_call_operand.vmem [shape: f32[32,128], index: 13, kind: output, shape index: {}]
  %s14 = sld [smem:[#allocation0]]
  $region62: #{rcb_forward.1} parent=0
    _
  %s16 = ssub.s32 1, %s14
  %s17 = scalar_select 0, %s16, %s14
  // Predicated region
  $region2: #{rcb_forward.1} parent=0 // pred_check
    _
  $region3: #{rcb_forward.1} parent=0 // pred_check_branch
    %19 = sbr.rel (0) target = $region5
  $region4: #{rcb_forward.1} parent=0 // pred_region
    _
  $region5: #{rcb_forward.1} parent=0 // pred_fallthru
    _
  // Predicated region
  $region6: #{rcb_forward.1} parent=0 // pred_check
    _
  $region7: #{rcb_forward.1} parent=0 // pred_check_branch
    %21 = sbr.rel (0) target = $region9
  $region8: #{rcb_forward.1} parent=0 // pred_region
    _
  $region9: #{rcb_forward.1} parent=0 // pred_fallthru
    _
  // Predicated region
  $region10: #{rcb_forward.1} parent=0 // pred_check
    _
  $region11: #{rcb_forward.1} parent=0 // pred_check_branch
    %23 = sbr.rel (0) target = $region13
  $region12: #{rcb_forward.1} parent=0 // pred_region
    _
  $region13: #{rcb_forward.1} parent=0 // pred_fallthru
    _
  // Predicated region
  $region14: #{rcb_forward.1} parent=0 // pred_check
    _
  $region15: #{rcb_forward.1} parent=0 // pred_check_branch
    %25 = sbr.rel (0) target = $region17
  $region16: #{rcb_forward.1} parent=0 // pred_region
    _
  $region17: #{rcb_forward.1} parent=0 // pred_fallthru
    _
  // Predicated region
  $region18: #{rcb_forward.1} parent=0 // pred_check
    _
  $region19: #{rcb_forward.1} parent=0 // pred_check_branch
    %27 = sbr.rel (0) target = $region21
  $region20: #{rcb_forward.1} parent=0 // pred_region
    _
  $region21: #{rcb_forward.1} parent=0 // pred_fallthru
    _
  // Predicated region
  $region22: #{rcb_forward.1} parent=0 // pred_check
    _
  $region23: #{rcb_forward.1} parent=0 // pred_check_branch
    %29 = sbr.rel (0) target = $region25
  $region24: #{rcb_forward.1} parent=0 // pred_region
    _
  $region25: #{rcb_forward.1} parent=0 // pred_fallthru
    _
  // Predicated region
  $region26: #{rcb_forward.1} parent=0 // pred_check
    _
  $region27: #{rcb_forward.1} parent=0 // pred_check_branch
    %31 = sbr.rel (0) target = $region29
  $region28: #{rcb_forward.1} parent=0 // pred_region
    _
  $region29: #{rcb_forward.1} parent=0 // pred_fallthru
    _
  // Predicated region
  $region30: #{rcb_forward.1} parent=0 // pred_check
    _
  $region31: #{rcb_forward.1} parent=0 // pred_check_branch
    %33 = sbr.rel (0) target = $region33
  $region32: #{rcb_forward.1} parent=0 // pred_region
    _
  $region33: #{rcb_forward.1} parent=0 // pred_fallthru
    _
  // Predicated region
  $region34: #{rcb_forward.1} parent=0 // pred_check
    _
  $region35: #{rcb_forward.1} parent=0 // pred_check_branch
    %35 = sbr.rel (0) target = $region37
  $region36: #{rcb_forward.1} parent=0 // pred_region
    _
  $region37: #{rcb_forward.1} parent=0 // pred_fallthru
    _
  // Predicated region
  $region38: #{rcb_forward.1} parent=0 // pred_check
    _
  $region39: #{rcb_forward.1} parent=0 // pred_check_branch
    %37 = sbr.rel (0) target = $region41
  $region40: #{rcb_forward.1} parent=0 // pred_region
    _
  $region41: #{rcb_forward.1} parent=0 // pred_fallthru
    _
  // Predicated region
  $region42: #{rcb_forward.1} parent=0 // pred_check
    _
  $region43: #{rcb_forward.1} parent=0 // pred_check_branch
    %39 = sbr.rel (0) target = $region45
  $region44: #{rcb_forward.1} parent=0 // pred_region
    _
  $region45: #{rcb_forward.1} parent=0 // pred_fallthru
    _
  // Predicated region
  $region46: #{rcb_forward.1} parent=0 // pred_check
    _
  $region47: #{rcb_forward.1} parent=0 // pred_check_branch
    %41 = sbr.rel (0) target = $region49
  $region48: #{rcb_forward.1} parent=0 // pred_region
    _
  $region49: #{rcb_forward.1} parent=0 // pred_fallthru
    _
  // Predicated region
  $region50: #{rcb_forward.1} parent=0 // pred_check
    _
  $region51: #{rcb_forward.1} parent=0 // pred_check_branch
    %43 = sbr.rel (0) target = $region53
  $region52: #{rcb_forward.1} parent=0 // pred_region
    _
  $region53: #{rcb_forward.1} parent=0 // pred_fallthru
    _
  %v45 = vld [vmem:[%s0] sm:$0xff]
  %v46 = vld [vmem:[%s0 + $0x8] sm:$0xff]
  %v47 = vld [vmem:[%s0 + $0x10] sm:$0xff]
  %v48 = vld [vmem:[%s0 + $0x18] sm:$0xff]
  %v49 = vld [vmem:[%s1] sm:$0x1]
  %v50 = vld [vmem:[%s2] sm:$0x1]
  %v51 = vld [vmem:[%s9] sm:$0xff]
  %v52 = vld [vmem:[%s9 + $0x8] sm:$0xff]
  %v53 = vld [vmem:[%s9 + $0x10] sm:$0xff]
  %v54 = vld [vmem:[%s9 + $0x18] sm:$0xff]
  %v55 = vld [vmem:[%s9 + $0x20] sm:$0xff]
  %v56 = vld [vmem:[%s9 + $0x28] sm:$0xff]
  %v57 = vld [vmem:[%s9 + $0x30] sm:$0xff]
  %v58 = vld [vmem:[%s9 + $0x38] sm:$0xff]
  %v59 = vld [vmem:[%s10] sm:$0xf]
  %vm60 = vcmask 523264
  %v61 = vsel %vm60, %v45, 0.0
  %v62 = vsel %vm60, %v46, 0.0
  %v63 = vadd.f32 %v61, %v62
  %v64 = vsel %vm60, %v47, 0.0
  %v65 = vadd.f32 %v63, %v64
  %v66 = vsel %vm60, %v48, 0.0
  %v67 = vadd.f32 %v65, %v66
  %v68 = vrot.slane %v67, 4
  %v69 = vadd.f32 %v67, %v68
  %v70 = vrot.slane %v69, 2
  %v71 = vadd.f32 %v69, %v70
  %v72 = vrot.slane %v71, 1
  %v73 = vadd.f32 %v71, %v72
  %v74 = vmul.f32 %v45, %v45
  %v75 = vmul.f32 %v46, %v46
  %v76 = vmul.f32 %v47, %v47
  %v77 = vmul.f32 %v48, %v48
  %v78 = vsel %vm60, %v74, 0.0
  %v79 = vsel %vm60, %v75, 0.0
  %v80 = vadd.f32 %v78, %v79
  %v81 = vsel %vm60, %v76, 0.0
  %v82 = vadd.f32 %v80, %v81
  %v83 = vsel %vm60, %v77, 0.0
  %v84 = vadd.f32 %v82, %v83
  %v85 = vrot.slane %v84, 4
  %v86 = vadd.f32 %v84, %v85
  %v87 = vrot.slane %v86, 2
  %v88 = vadd.f32 %v86, %v87
  %v89 = vrot.slane %v88, 1
  %v90 = vadd.f32 %v88, %v89
  %vm91 = vcmask 1040384
  %v92 = vsel %vm91, %v73, %v90
  %v94 = vsel %vm60, %v92, 0
  %96 = vmatprep.subr.mxu0 0.0
  %97 = vmatpush1.msra.mxu0 0.0
  %98 = vmatprep.subr.mxu0 0.0
  %99 = vmatpush1.msra.mxu0 0.0
  %100 = vmatprep.subr.mxu0 0.0
  %101 = vmatpush1.msra.mxu0 0.0
  %102 = vmatprep.subr.mxu0 0.0
  %103 = vmatpush1.msra.mxu0 0.0
  %104 = vmatprep.subr.mxu0 0.0
  %105 = vmatpush1.msra.mxu0 0.0
  %106 = vmatprep.subr.mxu0 0.0
  %107 = vmatpush1.msra.mxu0 0.0
  %108 = vmatprep.subr.mxu0 0.0
  %109 = vmatpush1.msra.mxu0 0.0
  %110 = vmatprep.subr.mxu0 0.0
  %111 = vmatpush1.msra.mxu0 0.0
  %112 = vmatprep.subr.mxu0 0.0
  %113 = vmatpush1.msra.mxu0 %v58
  %114 = vmatprep.subr.mxu0 0.0
  %115 = vmatpush1.msra.mxu0 %v57
  %116 = vmatprep.subr.mxu0 0.0
  %117 = vmatpush1.msra.mxu0 %v56
  %118 = vmatprep.subr.mxu0 0.0
  %119 = vmatpush1.msra.mxu0 %v55
  %120 = vmatprep.subr.mxu0 0.0
  %121 = vmatpush1.msra.mxu0 %v54
  %122 = vmatprep.subr.mxu0 0.0
  %123 = vmatpush1.msra.mxu0 %v53
  %124 = vmatprep.subr.mxu0 0.0
  %125 = vmatpush1.msra.mxu0 %v52
  %126 = vmatprep.subr.mxu0 0.0
  %127 = vmatpush1.msra.mxu0 %v51
  %128 = vmatprep.subr.mxu0 0.0
  %129 = vmatpush2.msra.mxu0 0.0
  %130 = vmatprep.subr.mxu0 0.0
  %131 = vmatpush2.msra.mxu0 0.0
  %132 = vmatprep.subr.mxu0 0.0
  %133 = vmatpush2.msra.mxu0 0.0
  %134 = vmatprep.subr.mxu0 0.0
  %135 = vmatpush2.msra.mxu0 0.0
  %136 = vmatprep.subr.mxu0 0.0
  %137 = vmatpush2.msra.mxu0 0.0
  %138 = vmatprep.subr.mxu0 0.0
  %139 = vmatpush2.msra.mxu0 0.0
  %140 = vmatprep.subr.mxu0 0.0
  %141 = vmatpush2.msra.mxu0 0.0
  %142 = vmatprep.subr.mxu0 0.0
  %143 = vmatpush2.msra.mxu0 0.0
  %144 = vmatprep.subr.mxu0 0.0
  %145 = vmatpush2.msra.mxu0 0.0
  %146 = vmatprep.subr.mxu0 0.0
  %147 = vmatpush2.msra.mxu0 0.0
  %148 = vmatprep.subr.mxu0 0.0
  %149 = vmatpush2.msra.mxu0 0.0
  %150 = vmatprep.subr.mxu0 0.0
  %151 = vmatpush2.msra.mxu0 0.0
  %152 = vmatprep.subr.mxu0 0.0
  %153 = vmatpush2.msra.mxu0 0.0
  %154 = vmatprep.subr.mxu0 0.0
  %155 = vmatpush2.msra.mxu0 0.0
  %156 = vmatprep.subr.mxu0 0.0
  %157 = vmatpush2.msra.mxu0 0.0
  %158 = vmatprep.subr.mxu0 0.0
  %159 = vmatpush2.msra.mxu0 0.0
  %160 = vmatprep.mubr.f32.mxu0 0.0
  %161 = vmatmul.mubr.f32.gmra.mxu0 %v94
  %v162 = vpop.f32.mrf.mxu0
  %v163 = vadd.f32 0.0, %v162
  %v164 = vpop.f32.mrf.mxu0
  %165 = vdwg.mxu0
  %v166 = vmul.f32 %v163, 0.001953125
  %v167 = vmul.f32 %v166, %v166
  %v169 = vrot.slane %v167, 7
  %v171 = vsub.f32 %v166, %v169
  %v172 = vadd.f32 %v171, 1e-05
  %v173 = vrsqrt.pop %v172
  %v176 = vunpack.c.l.s4 1966171168
  %v177 = vunpack.c.0.s8 %v176
  %v178 = vlaneseq
  %v179 = vshrl.u32 %v178, 7
  %v180 = vsub.s32 %v177, %v179
  %v181 = vrot.slane %v173, %v180
  %v182 = vcombine.high %v181, %v181
  %v184 = vunpack.c.l.s4 1966171168
  %v185 = vunpack.c.0.s8 %v184
  %v186 = vlaneseq
  %v187 = vshrl.u32 %v186, 7
  %v188 = vsub.s32 %v185, %v187
  %v189 = vrot.slane %v182, %v188
  %v191 = vmul.f32 %v49, %v189
  %v192 = vmul.f32 %v166, %v191
  %v193 = vsub.f32 %v50, %v192
  %v195 = vlaneseq
  %v196 = vshrl.u32 %v195, 7
  %v197 = vsub.s32 0, %v196
  %v198 = vrot.slane %v193, %v197
  %v200 = vsel %vm91, %v191, %v198
  %vm201 = vcmask 31744
  %v203 = vsel %vm201, %v200, 0
  %vm205 = vcmask 1043456
  %v207 = vsel %vm205, %v59, 0
  %209 = vmatprep.subr.mxu0 0.0
  %210 = vmatpush1.msra.mxu0 0.0
  %211 = vmatprep.subr.mxu0 0.0
  %212 = vmatpush1.msra.mxu0 0.0
  %213 = vmatprep.subr.mxu0 0.0
  %214 = vmatpush1.msra.mxu0 0.0
  %215 = vmatprep.subr.mxu0 0.0
  %216 = vmatpush1.msra.mxu0 0.0
  %217 = vmatprep.subr.mxu0 0.0
  %218 = vmatpush1.msra.mxu0 0.0
  %219 = vmatprep.subr.mxu0 0.0
  %220 = vmatpush1.msra.mxu0 0.0
  %221 = vmatprep.subr.mxu0 0.0
  %222 = vmatpush1.msra.mxu0 0.0
  %223 = vmatprep.subr.mxu0 0.0
  %224 = vmatpush1.msra.mxu0 0.0
  %225 = vmatprep.subr.mxu0 0.0
  %226 = vmatpush1.msra.mxu0 0.0
  %227 = vmatprep.subr.mxu0 0.0
  %228 = vmatpush1.msra.mxu0 0.0
  %229 = vmatprep.subr.mxu0 0.0
  %230 = vmatpush1.msra.mxu0 0.0
  %231 = vmatprep.subr.mxu0 0.0
  %232 = vmatpush1.msra.mxu0 0.0
  %233 = vmatprep.subr.mxu0 0.0
  %234 = vmatpush1.msra.mxu0 0.0
  %235 = vmatprep.subr.mxu0 0.0
  %236 = vmatpush1.msra.mxu0 0.0
  %237 = vmatprep.subr.mxu0 0.0
  %238 = vmatpush1.msra.mxu0 0.0
  %239 = vmatprep.subr.mxu0 0.0
  %240 = vmatpush1.msra.mxu0 %v207
  %241 = vmatprep.subr.mxu0 0.0
  %242 = vmatpush2.msra.mxu0 0.0
  %243 = vmatprep.subr.mxu0 0.0
  %244 = vmatpush2.msra.mxu0 0.0
  %245 = vmatprep.subr.mxu0 0.0
  %246 = vmatpush2.msra.mxu0 0.0
  %247 = vmatprep.subr.mxu0 0.0
  %248 = vmatpush2.msra.mxu0 0.0
  %249 = vmatprep.subr.mxu0 0.0
  %250 = vmatpush2.msra.mxu0 0.0
  %251 = vmatprep.subr.mxu0 0.0
  %252 = vmatpush2.msra.mxu0 0.0
  %253 = vmatprep.subr.mxu0 0.0
  %254 = vmatpush2.msra.mxu0 0.0
  %255 = vmatprep.subr.mxu0 0.0
  %256 = vmatpush2.msra.mxu0 0.0
  %257 = vmatprep.subr.mxu0 0.0
  %258 = vmatpush2.msra.mxu0 0.0
  %259 = vmatprep.subr.mxu0 0.0
  %260 = vmatpush2.msra.mxu0 0.0
  %261 = vmatprep.subr.mxu0 0.0
  %262 = vmatpush2.msra.mxu0 0.0
  %263 = vmatprep.subr.mxu0 0.0
  %264 = vmatpush2.msra.mxu0 0.0
  %265 = vmatprep.subr.mxu0 0.0
  %266 = vmatpush2.msra.mxu0 0.0
  %267 = vmatprep.subr.mxu0 0.0
  %268 = vmatpush2.msra.mxu0 0.0
  %269 = vmatprep.subr.mxu0 0.0
  %270 = vmatpush2.msra.mxu0 0.0
  %271 = vmatprep.subr.mxu0 0.0
  %272 = vmatpush2.msra.mxu0 0.0
  %273 = vmatprep.mubr.f32.mxu0 0.0
  %274 = vmatmul.mubr.f32.gmra.mxu0 %v203
  %v275 = vpop.f32.mrf.mxu0
  %v276 = vadd.f32 0.0, %v275
  %v277 = vpop.f32.mrf.mxu0
  %278 = vdwg.mxu0
  %v279 = vlaneseq
  %v280 = vshrl.u32 %v279, 7
  %v281 = vsub.s32 0, %v280
  %v282 = vrot.slane %v276, %v281
  %v283 = vmul.f32 %v45, %v282
  %v284 = vmul.f32 %v46, %v282
  %v285 = vmul.f32 %v47, %v282
  %v286 = vmul.f32 %v48, %v282
  %v287 = vlaneseq
  %v288 = vshrl.u32 %v287, 7
  %v289 = vsub.s32 1, %v288
  %v290 = vrot.slane %v276, %v289
  %v291 = vadd.f32 %v283, %v290
  %v292 = vadd.f32 %v284, %v290
  %v293 = vadd.f32 %v285, %v290
  %v294 = vadd.f32 %v286, %v290
  %v295 = vxor.u32 %v291, 2147483648
  %v296 = vxor.u32 %v292, 2147483648
  %v297 = vxor.u32 %v293, 2147483648
  %v298 = vxor.u32 %v294, 2147483648
  %v299 = vmul.f32 %v295, 1.442695
  %v300 = vpow.pop %v299
  %v301 = vmul.f32 %v296, 1.442695
  %v302 = vpow.pop %v301
  %v303 = vmul.f32 %v297, 1.442695
  %v304 = vpow.pop %v303
  %v305 = vmul.f32 %v298, 1.442695
  %v306 = vpow.pop %v305
  %v307 = vadd.f32 %v300, 1.0
  %v308 = vadd.f32 %v302, 1.0
  %v309 = vadd.f32 %v304, 1.0
  %v310 = vadd.f32 %v306, 1.0
  %v311 = vrcp.pop %v307
  %v312 = vmul.f32 1.0, %v311
  %v313 = vrcp.pop %v308
  %v314 = vmul.f32 1.0, %v313
  %v315 = vrcp.pop %v309
  %v316 = vmul.f32 1.0, %v315
  %v317 = vrcp.pop %v310
  %v318 = vmul.f32 1.0, %v317
  %v319 = vmul.f32 %v291, %v312
  %v320 = vmul.f32 %v292, %v314
  %v321 = vmul.f32 %v293, %v316
  %v322 = vmul.f32 %v294, %v318
  %vm323 = vcmask 516096
  %324 = vst.msk [vmem:[#allocation2] sm:$0x1] %vm323, 0.0
  %325 = vst.msk [vmem:[#allocation2 + $0x18] sm:$0x1] %vm323, 0.0
  %326 = vst.msk [vmem:[#allocation2 + $0x11] sm:$0x1] %vm323, 0.0
  %327 = vst.msk [vmem:[#allocation2 + $0x29] sm:$0x1] %vm323, 0.0
  %328 = vst.msk [vmem:[#allocation2 + $0x1] sm:$0xff] %vm60, %v319
  %329 = vst.msk [vmem:[#allocation2 + $0x9] sm:$0xff] %vm60, %v320
  %330 = vst.msk [vmem:[#allocation2 + $0x19] sm:$0xff] %vm60, %v321
  %331 = vst.msk [vmem:[#allocation2 + $0x21] sm:$0xff] %vm60, %v322
  %v332 = vld [vmem:[#allocation2] sm:$0xff]
  %v333 = vld [vmem:[#allocation2 + $0x8] sm:$0xff]
  %v334 = vld [vmem:[#allocation2 + $0x18] sm:$0xff]
  %v335 = vld [vmem:[#allocation2 + $0x20] sm:$0xff]
  %340 = vrot.lane.b32.xlu0 %v332, 4
  %v341 = vpop.permute.xlu0 %340
  %342 = vrot.lane.b32.xlu0 %v333, 4
  %v343 = vpop.permute.xlu0 %342
  %344 = vrot.lane.b32.xlu0 %v334, 4
  %v345 = vpop.permute.xlu0 %344
  %346 = vrot.lane.b32.xlu0 %v335, 4
  %v347 = vpop.permute.xlu0 %346
  %v352 = vsel %vm201, 0.0, %v341
  %v353 = vsel %vm201, 0.0, %v343
  %v354 = vsel %vm201, 0.0, %v345
  %v355 = vsel %vm201, 0.0, %v347
  %356 = vrot.lane.b32.xlu0 %v332, 124
  %v357 = vpop.permute.xlu0 %356
  %358 = vrot.lane.b32.xlu0 %v333, 124
  %v359 = vpop.permute.xlu0 %358
  %360 = vrot.lane.b32.xlu0 %v334, 124
  %v361 = vpop.permute.xlu0 %360
  %362 = vrot.lane.b32.xlu0 %v335, 124
  %v363 = vpop.permute.xlu0 %362
  %vm368 = vcmask 490496
  %v369 = vsel %vm368, %v357, 0.0
  %v370 = vsel %vm368, %v359, 0.0
  %v371 = vsel %vm368, %v361, 0.0
  %v372 = vsel %vm368, %v363, 0.0
  %v373 = vld [vmem:[#allocation2 + $0x1] sm:$0xff]
  %v374 = vld [vmem:[#allocation2 + $0x9] sm:$0xff]
  %v375 = vld [vmem:[#allocation2 + $0x19] sm:$0xff]
  %v376 = vld [vmem:[#allocation2 + $0x21] sm:$0xff]
  %381 = vrot.lane.b32.xlu0 %v373, 4
  %v382 = vpop.permute.xlu0 %381
  %383 = vrot.lane.b32.xlu0 %v374, 4
  %v384 = vpop.permute.xlu0 %383
  %385 = vrot.lane.b32.xlu0 %v375, 4
  %v386 = vpop.permute.xlu0 %385
  %387 = vrot.lane.b32.xlu0 %v376, 4
  %v388 = vpop.permute.xlu0 %387
  %v393 = vsel %vm201, 0.0, %v382
  %v394 = vsel %vm201, 0.0, %v384
  %v395 = vsel %vm201, 0.0, %v386
  %v396 = vsel %vm201, 0.0, %v388
  %397 = vrot.lane.b32.xlu0 %v373, 124
  %v398 = vpop.permute.xlu0 %397
  %399 = vrot.lane.b32.xlu0 %v374, 124
  %v400 = vpop.permute.xlu0 %399
  %401 = vrot.lane.b32.xlu0 %v375, 124
  %v402 = vpop.permute.xlu0 %401
  %403 = vrot.lane.b32.xlu0 %v376, 124
  %v404 = vpop.permute.xlu0 %403
  %v409 = vsel %vm368, %v398, 0.0
  %v410 = vsel %vm368, %v400, 0.0
  %v411 = vsel %vm368, %v402, 0.0
  %v412 = vsel %vm368, %v404, 0.0
  %v413 = vld [vmem:[#allocation2 + $0x2] sm:$0xff]
  %v414 = vld [vmem:[#allocation2 + $0xa] sm:$0xff]
  %v415 = vld [vmem:[#allocation2 + $0x1a] sm:$0xff]
  %v416 = vld [vmem:[#allocation2 + $0x22] sm:$0xff]
  %421 = vrot.lane.b32.xlu0 %v413, 4
  %v422 = vpop.permute.xlu0 %421
  %423 = vrot.lane.b32.xlu0 %v414, 4
  %v424 = vpop.permute.xlu0 %423
  %425 = vrot.lane.b32.xlu0 %v415, 4
  %v426 = vpop.permute.xlu0 %425
  %427 = vrot.lane.b32.xlu0 %v416, 4
  %v428 = vpop.permute.xlu0 %427
  %v433 = vsel %vm201, 0.0, %v422
  %v434 = vsel %vm201, 0.0, %v424
  %v435 = vsel %vm201, 0.0, %v426
  %v436 = vsel %vm201, 0.0, %v428
  %437 = vrot.lane.b32.xlu0 %v413, 124
  %v438 = vpop.permute.xlu0 %437
  %439 = vrot.lane.b32.xlu0 %v414, 124
  %v440 = vpop.permute.xlu0 %439
  %441 = vrot.lane.b32.xlu0 %v415, 124
  %v442 = vpop.permute.xlu0 %441
  %443 = vrot.lane.b32.xlu0 %v416, 124
  %v444 = vpop.permute.xlu0 %443
  %v449 = vsel %vm368, %v438, 0.0
  %v450 = vsel %vm368, %v440, 0.0
  %v451 = vsel %vm368, %v442, 0.0
  %v452 = vsel %vm368, %v444, 0.0
  %453 = vrot.lane.b32.xlu0 %v332, 64
  %v454 = vpop.permute.xlu0 %453
  %455 = vrot.lane.b32.xlu0 %v333, 64
  %v456 = vpop.permute.xlu0 %455
  %457 = vrot.lane.b32.xlu0 %v334, 64
  %v458 = vpop.permute.xlu0 %457
  %459 = vrot.lane.b32.xlu0 %v335, 64
  %v460 = vpop.permute.xlu0 %459
  %469 = vrot.lane.b32.xlu0 %v393, 64
  %v470 = vpop.permute.xlu0 %469
  %471 = vrot.lane.b32.xlu0 %v394, 64
  %v472 = vpop.permute.xlu0 %471
  %473 = vrot.lane.b32.xlu0 %v395, 64
  %v474 = vpop.permute.xlu0 %473
  %475 = vrot.lane.b32.xlu0 %v396, 64
  %v476 = vpop.permute.xlu0 %475
  %485 = vrot.lane.b32.xlu0 %v409, 64
  %v486 = vpop.permute.xlu0 %485
  %487 = vrot.lane.b32.xlu0 %v410, 64
  %v488 = vpop.permute.xlu0 %487
  %489 = vrot.lane.b32.xlu0 %v411, 64
  %v490 = vpop.permute.xlu0 %489
  %491 = vrot.lane.b32.xlu0 %v412, 64
  %v492 = vpop.permute.xlu0 %491
  %497 = vrot.lane.b32.xlu0 %v413, 64
  %v498 = vpop.permute.xlu0 %497
  %499 = vrot.lane.b32.xlu0 %v414, 64
  %v500 = vpop.permute.xlu0 %499
  %501 = vrot.lane.b32.xlu0 %v415, 64
  %v502 = vpop.permute.xlu0 %501
  %503 = vrot.lane.b32.xlu0 %v416, 64
  %v504 = vpop.permute.xlu0 %503
  %v509 = vsel %vm60, %v352, %v454
  %v510 = vsel %vm60, %v353, %v456
  %v511 = vsel %vm60, %v354, %v458
  %v512 = vsel %vm60, %v355, %v460
  %v513 = vsel %vm60, %v369, %v470
  %v514 = vsel %vm60, %v370, %v472
  %v515 = vsel %vm60, %v371, %v474
  %v516 = vsel %vm60, %v372, %v476
  %v517 = vsel %vm60, %v373, %v486
  %v518 = vsel %vm60, %v374, %v488
  %v519 = vsel %vm60, %v375, %v490
  %v520 = vsel %vm60, %v376, %v492
  %v521 = vsel %vm60, %v433, %v498
  %v522 = vsel %vm60, %v434, %v500
  %v523 = vsel %vm60, %v435, %v502
  %v524 = vsel %vm60, %v436, %v504
  %v525 = vpack.c.bf16 %v510, %v509
  %v526 = vpack.c.bf16 %v514, %v513
  %v527 = vpack.c.bf16 %v518, %v517
  %v528 = vpack.c.bf16 %v522, %v521
  %v529 = vpack.c.bf16 %v450, %v449
  %v530 = vpack.c.bf16 %v512, %v511
  %v531 = vpack.c.bf16 %v516, %v515
  %v532 = vpack.c.bf16 %v520, %v519
  %v533 = vpack.c.bf16 %v524, %v523
  %v534 = vpack.c.bf16 %v452, %v451
  %v535 = vld [vmem:[%s3] sm:$0xf]
  %v536 = vld [vmem:[%s3 + $0x4] sm:$0xf]
  %v537 = vld [vmem:[%s3 + $0x8] sm:$0xf]
  %v538 = vld [vmem:[%s3 + $0xc] sm:$0xf]
  %v539 = vld [vmem:[%s3 + $0x10] sm:$0xf]
  %v540 = vld [vmem:[%s3 + $0x14] sm:$0xf]
  %v541 = vld [vmem:[%s3 + $0x18] sm:$0xf]
  %v542 = vld [vmem:[%s3 + $0x1c] sm:$0xf]
  %v543 = vld [vmem:[%s3 + $0x20] sm:$0xf]
  %v544 = vld [vmem:[%s3 + $0x24] sm:$0xf]
  %v545 = vld [vmem:[%s3 + $0x28] sm:$0xf]
  %v546 = vld [vmem:[%s3 + $0x2c] sm:$0xf]
  %v547 = vld [vmem:[%s3 + $0x30] sm:$0xf]
  %v548 = vld [vmem:[%s3 + $0x34] sm:$0xf]
  %v549 = vld [vmem:[%s3 + $0x38] sm:$0xf]
  %v550 = vld [vmem:[%s3 + $0x3c] sm:$0xf]
  %v551 = vld [vmem:[%s3 + $0x40] sm:$0xf]
  %v552 = vld [vmem:[%s3 + $0x44] sm:$0xf]
  %v553 = vld [vmem:[%s3 + $0x48] sm:$0xf]
  %v554 = vld [vmem:[%s3 + $0x4c] sm:$0xf]
  %v555 = vld [vmem:[%s3 + $0x50] sm:$0xf]
  %v556 = vld [vmem:[%s3 + $0x54] sm:$0xf]
  %v557 = vld [vmem:[%s3 + $0x58] sm:$0xf]
  %v558 = vld [vmem:[%s3 + $0x5c] sm:$0xf]
  %v559 = vld [vmem:[%s3 + $0x60] sm:$0xf]
  %v560 = vld [vmem:[%s3 + $0x64] sm:$0xf]
  %v561 = vld [vmem:[%s3 + $0x68] sm:$0xf]
  %v562 = vld [vmem:[%s3 + $0x6c] sm:$0xf]
  %v563 = vld [vmem:[%s3 + $0x70] sm:$0xf]
  %v564 = vld [vmem:[%s3 + $0x74] sm:$0xf]
  %v565 = vld [vmem:[%s3 + $0x78] sm:$0xf]
  %v566 = vld [vmem:[%s3 + $0x7c] sm:$0xf]
  %v567 = vld [vmem:[%s3 + $0x80] sm:$0xf]
  %v568 = vld [vmem:[%s3 + $0x84] sm:$0xf]
  %v569 = vld [vmem:[%s3 + $0x88] sm:$0xf]
  %v570 = vld [vmem:[%s3 + $0x8c] sm:$0xf]
  %v571 = vld [vmem:[%s3 + $0x90] sm:$0xf]
  %v572 = vld [vmem:[%s3 + $0x94] sm:$0xf]
  %v573 = vld [vmem:[%s3 + $0x98] sm:$0xf]
  %v574 = vld [vmem:[%s3 + $0x9c] sm:$0xf]
  %v575 = vld [vmem:[%s3 + $0xa0] sm:$0xf]
  %v576 = vld [vmem:[%s3 + $0xa4] sm:$0xf]
  %v577 = vld [vmem:[%s3 + $0xa8] sm:$0xf]
  %v578 = vld [vmem:[%s3 + $0xac] sm:$0xf]
  %v579 = vld [vmem:[%s3 + $0xb0] sm:$0xf]
  %v580 = vld [vmem:[%s3 + $0xb4] sm:$0xf]
  %v581 = vld [vmem:[%s3 + $0xb8] sm:$0xf]
  %v582 = vld [vmem:[%s3 + $0xbc] sm:$0xf]
  %v583 = vld [vmem:[%s3 + $0xc0] sm:$0xf]
  %v584 = vld [vmem:[%s3 + $0xc4] sm:$0xf]
  %v585 = vld [vmem:[%s3 + $0xc8] sm:$0xf]
  %v586 = vld [vmem:[%s3 + $0xcc] sm:$0xf]
  %v587 = vld [vmem:[%s3 + $0xd0] sm:$0xf]
  %v588 = vld [vmem:[%s3 + $0xd4] sm:$0xf]
  %v589 = vld [vmem:[%s3 + $0xd8] sm:$0xf]
  %v590 = vld [vmem:[%s3 + $0xdc] sm:$0xf]
  %v591 = vld [vmem:[%s3 + $0xe0] sm:$0xf]
  %v592 = vld [vmem:[%s3 + $0xe4] sm:$0xf]
  %v593 = vld [vmem:[%s3 + $0xe8] sm:$0xf]
  %v594 = vld [vmem:[%s3 + $0xec] sm:$0xf]
  %v595 = vld [vmem:[%s3 + $0xf0] sm:$0xf]
  %v596 = vld [vmem:[%s3 + $0xf4] sm:$0xf]
  %v597 = vld [vmem:[%s3 + $0xf8] sm:$0xf]
  %v598 = vld [vmem:[%s3 + $0xfc] sm:$0xf]
  %v599 = vld [vmem:[%s3 + $0x100] sm:$0xf]
  %v600 = vld [vmem:[%s3 + $0x104] sm:$0xf]
  %v601 = vld [vmem:[%s3 + $0x108] sm:$0xf]
  %v602 = vld [vmem:[%s3 + $0x10c] sm:$0xf]
  %v603 = vld [vmem:[%s3 + $0x110] sm:$0xf]
  %v604 = vld [vmem:[%s3 + $0x114] sm:$0xf]
  %v605 = vld [vmem:[%s3 + $0x118] sm:$0xf]
  %v606 = vld [vmem:[%s3 + $0x11c] sm:$0xf]
  %v607 = vld [vmem:[%s4] sm:$0x1]
  %v609 = vlaneseq
  %v610 = vshrl.u32 %v609, 7
  %v611 = vsub.s32 0, %v610
  %v612 = vrot.slane %v607, %v611
  %v686 = vunpack.c.l.b16 %v535
  %v687 = vunpack.c.l.b16 %v536
  %v688 = vunpack.c.l.b16 %v537
  %v689 = vunpack.c.l.b16 %v538
  %v690 = vunpack.c.l.b16 %v539
  %v691 = vunpack.c.l.b16 %v540
  %v692 = vunpack.c.l.b16 %v541
  %v693 = vunpack.c.l.b16 %v542
  %v694 = vunpack.c.l.b16 %v543
  %v695 = vunpack.c.l.b16 %v544
  %v696 = vunpack.c.l.b16 %v545
  %v697 = vunpack.c.l.b16 %v546
  %v698 = vunpack.c.l.b16 %v547
  %v699 = vunpack.c.l.b16 %v548
  %v700 = vunpack.c.l.b16 %v549
  %v701 = vunpack.c.l.b16 %v550
  %v702 = vunpack.c.l.b16 %v551
  %v703 = vunpack.c.l.b16 %v552
  %v704 = vunpack.c.l.b16 %v553
  %v705 = vunpack.c.l.b16 %v554
  %v706 = vunpack.c.l.b16 %v555
  %v707 = vunpack.c.l.b16 %v556
  %v708 = vunpack.c.l.b16 %v557
  %v709 = vunpack.c.l.b16 %v558
  %v710 = vunpack.c.l.b16 %v559
  %v711 = vunpack.c.l.b16 %v560
  %v712 = vunpack.c.l.b16 %v561
  %v713 = vunpack.c.l.b16 %v562
  %v714 = vunpack.c.l.b16 %v563
  %v715 = vunpack.c.l.b16 %v564
  %v716 = vunpack.c.l.b16 %v565
  %v717 = vunpack.c.l.b16 %v566
  %v718 = vunpack.c.l.b16 %v567
  %v719 = vunpack.c.l.b16 %v568
  %v720 = vunpack.c.l.b16 %v569
  %v721 = vunpack.c.l.b16 %v570
  %v722 = vunpack.c.l.b16 %v571
  %v723 = vunpack.c.l.b16 %v572
  %v724 = vunpack.c.l.b16 %v573
  %v725 = vunpack.c.l.b16 %v574
  %v726 = vunpack.c.l.b16 %v575
  %v727 = vunpack.c.l.b16 %v576
  %v728 = vunpack.c.l.b16 %v577
  %v729 = vunpack.c.l.b16 %v578
  %v730 = vunpack.c.l.b16 %v579
  %v731 = vunpack.c.l.b16 %v580
  %v732 = vunpack.c.l.b16 %v581
  %v733 = vunpack.c.l.b16 %v582
  %v734 = vunpack.c.l.b16 %v583
  %v735 = vunpack.c.l.b16 %v584
  %v736 = vunpack.c.l.b16 %v585
  %v737 = vunpack.c.l.b16 %v586
  %v738 = vunpack.c.l.b16 %v587
  %v739 = vunpack.c.l.b16 %v588
  %v740 = vunpack.c.l.b16 %v589
  %v741 = vunpack.c.l.b16 %v590
  %v742 = vunpack.c.l.b16 %v591
  %v743 = vunpack.c.l.b16 %v592
  %v744 = vunpack.c.l.b16 %v593
  %v745 = vunpack.c.l.b16 %v594
  %v746 = vunpack.c.l.b16 %v595
  %v747 = vunpack.c.l.b16 %v596
  %v748 = vunpack.c.l.b16 %v597
  %v749 = vunpack.c.l.b16 %v598
  %v750 = vunpack.c.l.b16 %v599
  %v751 = vunpack.c.l.b16 %v600
  %v752 = vunpack.c.l.b16 %v601
  %v753 = vunpack.c.l.b16 %v602
  %v754 = vunpack.c.l.b16 %v603
  %v755 = vunpack.c.l.b16 %v604
  %v756 = vunpack.c.l.b16 %v605
  %v757 = vunpack.c.l.b16 %v606
  %v758 = vpack.c.b16 %v687, %v686
  %v759 = vpack.c.b16 %v689, %v688
  %v760 = vpack.c.b16 %v691, %v690
  %v761 = vpack.c.b16 %v693, %v692
  %v762 = vpack.c.b16 %v695, %v694
  %v763 = vpack.c.b16 %v697, %v696
  %v764 = vpack.c.b16 %v699, %v698
  %v765 = vpack.c.b16 %v701, %v700
  %v766 = vpack.c.b16 %v703, %v702
  %v767 = vpack.c.b16 %v705, %v704
  %v768 = vpack.c.b16 %v707, %v706
  %v769 = vpack.c.b16 %v709, %v708
  %v770 = vpack.c.b16 %v711, %v710
  %v771 = vpack.c.b16 %v713, %v712
  %v772 = vpack.c.b16 %v715, %v714
  %v773 = vpack.c.b16 %v717, %v716
  %v774 = vpack.c.b16 %v719, %v718
  %v775 = vpack.c.b16 %v721, %v720
  %v776 = vpack.c.b16 %v723, %v722
  %v777 = vpack.c.b16 %v725, %v724
  %v778 = vpack.c.b16 %v727, %v726
  %v779 = vpack.c.b16 %v729, %v728
  %v780 = vpack.c.b16 %v731, %v730
  %v781 = vpack.c.b16 %v733, %v732
  %v782 = vpack.c.b16 %v735, %v734
  %v783 = vpack.c.b16 %v737, %v736
  %v784 = vpack.c.b16 %v739, %v738
  %v785 = vpack.c.b16 %v741, %v740
  %v786 = vpack.c.b16 %v743, %v742
  %v787 = vpack.c.b16 %v745, %v744
  %v788 = vpack.c.b16 %v747, %v746
  %v789 = vpack.c.b16 %v749, %v748
  %v790 = vpack.c.b16 %v751, %v750
  %v791 = vpack.c.b16 %v753, %v752
  %v792 = vpack.c.b16 %v755, %v754
  %v793 = vpack.c.b16 %v757, %v756
  %v831 = vsel %vm60, %v529, 0
  %v834 = vsel %vm60, %v534, 0
  %836 = vmatprep.subr.bf16.mxu0 0
  %837 = vmatpush1.bf16.msra.mxu0 %v765
  %838 = vmatprep.subr.bf16.mxu0 0
  %839 = vmatpush1.bf16.msra.mxu0 %v764
  %840 = vmatprep.subr.bf16.mxu0 0
  %841 = vmatpush1.bf16.msra.mxu0 %v763
  %842 = vmatprep.subr.bf16.mxu0 0
  %843 = vmatpush1.bf16.msra.mxu0 %v762
  %844 = vmatprep.subr.bf16.mxu0 0
  %845 = vmatpush1.bf16.msra.mxu0 %v761
  %846 = vmatprep.subr.bf16.mxu0 0
  %847 = vmatpush1.bf16.msra.mxu0 %v760
  %848 = vmatprep.subr.bf16.mxu0 0
  %849 = vmatpush1.bf16.msra.mxu0 %v759
  %850 = vmatprep.subr.bf16.mxu0 0
  %851 = vmatpush1.bf16.msra.mxu0 %v758
  %852 = vmatprep.subr.bf16.mxu0 0
  %853 = vmatpush2.bf16.msra.mxu0 %v773
  %854 = vmatprep.subr.bf16.mxu0 0
  %855 = vmatpush2.bf16.msra.mxu0 %v772
  %856 = vmatprep.subr.bf16.mxu0 0
  %857 = vmatpush2.bf16.msra.mxu0 %v771
  %858 = vmatprep.subr.bf16.mxu0 0
  %859 = vmatpush2.bf16.msra.mxu0 %v770
  %860 = vmatprep.subr.bf16.mxu0 0
  %861 = vmatpush2.bf16.msra.mxu0 %v769
  %862 = vmatprep.subr.bf16.mxu0 0
  %863 = vmatpush2.bf16.msra.mxu0 %v768
  %864 = vmatprep.subr.bf16.mxu0 0
  %865 = vmatpush2.bf16.msra.mxu0 %v767
  %866 = vmatprep.subr.bf16.mxu0 0
  %867 = vmatpush2.bf16.msra.mxu0 %v766
  %868 = vmatprep.mubr.bf16.mxu0 %v526
  %869 = vmatmul.mubr.bf16.gmra.mxu0 %v525
  %v870 = vpop.f32.mrf.mxu0
  %v871 = vadd.f32 %v612, %v870
  %v872 = vpop.f32.mrf.mxu0
  %v873 = vpop.f32.mrf.mxu0
  %v874 = vadd.f32 %v612, %v873
  %v875 = vpop.f32.mrf.mxu0
  %876 = vmatprep.mubr.bf16.mxu0 %v531
  %877 = vmatmul.mubr.bf16.gmra.mxu0 %v530
  %v878 = vpop.f32.mrf.mxu0
  %v879 = vadd.f32 %v612, %v878
  %v880 = vpop.f32.mrf.mxu0
  %v881 = vpop.f32.mrf.mxu0
  %v882 = vadd.f32 %v612, %v881
  %v883 = vpop.f32.mrf.mxu0
  %884 = vdwg.mxu0
  %885 = vmatprep.subr.bf16.mxu0 0
  %886 = vmatpush1.bf16.msra.mxu0 %v781
  %887 = vmatprep.subr.bf16.mxu0 0
  %888 = vmatpush1.bf16.msra.mxu0 %v780
  %889 = vmatprep.subr.bf16.mxu0 0
  %890 = vmatpush1.bf16.msra.mxu0 %v779
  %891 = vmatprep.subr.bf16.mxu0 0
  %892 = vmatpush1.bf16.msra.mxu0 %v778
  %893 = vmatprep.subr.bf16.mxu0 0
  %894 = vmatpush1.bf16.msra.mxu0 %v777
  %895 = vmatprep.subr.bf16.mxu0 0
  %896 = vmatpush1.bf16.msra.mxu0 %v776
  %897 = vmatprep.subr.bf16.mxu0 0
  %898 = vmatpush1.bf16.msra.mxu0 %v775
  %899 = vmatprep.subr.bf16.mxu0 0
  %900 = vmatpush1.bf16.msra.mxu0 %v774
  %901 = vmatprep.subr.bf16.mxu0 0
  %902 = vmatpush2.bf16.msra.mxu0 %v789
  %903 = vmatprep.subr.bf16.mxu0 0
  %904 = vmatpush2.bf16.msra.mxu0 %v788
  %905 = vmatprep.subr.bf16.mxu0 0
  %906 = vmatpush2.bf16.msra.mxu0 %v787
  %907 = vmatprep.subr.bf16.mxu0 0
  %908 = vmatpush2.bf16.msra.mxu0 %v786
  %909 = vmatprep.subr.bf16.mxu0 0
  %910 = vmatpush2.bf16.msra.mxu0 %v785
  %911 = vmatprep.subr.bf16.mxu0 0
  %912 = vmatpush2.bf16.msra.mxu0 %v784
  %913 = vmatprep.subr.bf16.mxu0 0
  %914 = vmatpush2.bf16.msra.mxu0 %v783
  %915 = vmatprep.subr.bf16.mxu0 0
  %916 = vmatpush2.bf16.msra.mxu0 %v782
  %917 = vmatprep.mubr.bf16.mxu0 %v528
  %918 = vmatmul.mubr.bf16.gmra.mxu0 %v527
  %v919 = vpop.f32.mrf.mxu0
  %v920 = vadd.f32 %v871, %v919
  %v921 = vpop.f32.mrf.mxu0
  %v922 = vpop.f32.mrf.mxu0
  %v923 = vadd.f32 %v874, %v922
  %v924 = vpop.f32.mrf.mxu0
  %925 = vmatprep.mubr.bf16.mxu0 %v533
  %926 = vmatmul.mubr.bf16.gmra.mxu0 %v532
  %v927 = vpop.f32.mrf.mxu0
  %v928 = vadd.f32 %v879, %v927
  %v929 = vpop.f32.mrf.mxu0
  %v930 = vpop.f32.mrf.mxu0
  %v931 = vadd.f32 %v882, %v930
  %v932 = vpop.f32.mrf.mxu0
  %933 = vdwg.mxu0
  %934 = vmatprep.subr.bf16.mxu0 0
  %935 = vmatpush1.bf16.msra.mxu0 0
  %936 = vmatprep.subr.bf16.mxu0 0
  %937 = vmatpush1.bf16.msra.mxu0 0
  %938 = vmatprep.subr.bf16.mxu0 0
  %939 = vmatpush1.bf16.msra.mxu0 0
  %940 = vmatprep.subr.bf16.mxu0 0
  %941 = vmatpush1.bf16.msra.mxu0 0
  %942 = vmatprep.subr.bf16.mxu0 0
  %943 = vmatpush1.bf16.msra.mxu0 %v793
  %944 = vmatprep.subr.bf16.mxu0 0
  %945 = vmatpush1.bf16.msra.mxu0 %v792
  %946 = vmatprep.subr.bf16.mxu0 0
  %947 = vmatpush1.bf16.msra.mxu0 %v791
  %948 = vmatprep.subr.bf16.mxu0 0
  %949 = vmatpush1.bf16.msra.mxu0 %v790
  %950 = vmatprep.subr.bf16.mxu0 0
  %951 = vmatpush2.bf16.msra.mxu0 0
  %952 = vmatprep.subr.bf16.mxu0 0
  %953 = vmatpush2.bf16.msra.mxu0 0
  %954 = vmatprep.subr.bf16.mxu0 0
  %955 = vmatpush2.bf16.msra.mxu0 0
  %956 = vmatprep.subr.bf16.mxu0 0
  %957 = vmatpush2.bf16.msra.mxu0 0
  %958 = vmatprep.subr.bf16.mxu0 0
  %959 = vmatpush2.bf16.msra.mxu0 0
  %960 = vmatprep.subr.bf16.mxu0 0
  %961 = vmatpush2.bf16.msra.mxu0 0
  %962 = vmatprep.subr.bf16.mxu0 0
  %963 = vmatpush2.bf16.msra.mxu0 0
  %964 = vmatprep.subr.bf16.mxu0 0
  %965 = vmatpush2.bf16.msra.mxu0 0
  %966 = vmatprep.mubr.bf16.mxu0 0
  %967 = vmatmul.mubr.bf16.gmra.mxu0 %v831
  %v968 = vpop.f32.mrf.mxu0
  %v969 = vadd.f32 %v920, %v968
  %v970 = vpop.f32.mrf.mxu0
  %v971 = vpop.f32.mrf.mxu0
  %v972 = vadd.f32 %v923, %v971
  %v973 = vpop.f32.mrf.mxu0
  %974 = vmatprep.mubr.bf16.mxu0 0
  %975 = vmatmul.mubr.bf16.gmra.mxu0 %v834
  %v976 = vpop.f32.mrf.mxu0
  %v977 = vadd.f32 %v928, %v976
  %v978 = vpop.f32.mrf.mxu0
  %v979 = vpop.f32.mrf.mxu0
  %v980 = vadd.f32 %v931, %v979
  %v981 = vpop.f32.mrf.mxu0
  %982 = vdwg.mxu0
  %v983 = vld [vmem:[%s5] sm:$0x1]
  %v984 = vld [vmem:[%s6] sm:$0x1]
  %v985 = vld [vmem:[%s11] sm:$0xff]
  %v986 = vld [vmem:[%s11 + $0x8] sm:$0xff]
  %v987 = vld [vmem:[%s11 + $0x10] sm:$0xff]
  %v988 = vld [vmem:[%s11 + $0x18] sm:$0xff]
  %v989 = vld [vmem:[%s11 + $0x20] sm:$0xff]
  %v990 = vld [vmem:[%s11 + $0x28] sm:$0xff]
  %v991 = vld [vmem:[%s11 + $0x30] sm:$0xff]
  %v992 = vld [vmem:[%s11 + $0x38] sm:$0xff]
  %v993 = vld [vmem:[%s11 + $0x40] sm:$0xff]
  %v994 = vld [vmem:[%s11 + $0x48] sm:$0xff]
  %v995 = vld [vmem:[%s11 + $0x50] sm:$0xff]
  %v996 = vld [vmem:[%s11 + $0x58] sm:$0xff]
  %v997 = vld [vmem:[%s11 + $0x60] sm:$0xff]
  %v998 = vld [vmem:[%s11 + $0x68] sm:$0xff]
  %v999 = vld [vmem:[%s11 + $0x70] sm:$0xff]
  %v1000 = vld [vmem:[%s11 + $0x78] sm:$0xff]
  %v1001 = vld [vmem:[%s12] sm:$0xff]
  %v1002 = vadd.f32 %v969, %v972
  %v1003 = vadd.f32 %v1002, %v977
  %v1004 = vadd.f32 %v1003, %v980
  %v1005 = vrot.slane %v1004, 4
  %v1006 = vadd.f32 %v1004, %v1005
  %v1007 = vrot.slane %v1006, 2
  %v1008 = vadd.f32 %v1006, %v1007
  %v1009 = vrot.slane %v1008, 1
  %v1010 = vadd.f32 %v1008, %v1009
  %v1011 = vmul.f32 %v969, %v969
  %v1012 = vmul.f32 %v972, %v972
  %v1013 = vmul.f32 %v977, %v977
  %v1014 = vmul.f32 %v980, %v980
  %v1015 = vadd.f32 %v1011, %v1012
  %v1016 = vadd.f32 %v1015, %v1013
  %v1017 = vadd.f32 %v1016, %v1014
  %v1018 = vrot.slane %v1017, 4
  %v1019 = vadd.f32 %v1017, %v1018
  %v1020 = vrot.slane %v1019, 2
  %v1021 = vadd.f32 %v1019, %v1020
  %v1022 = vrot.slane %v1021, 1
  %v1023 = vadd.f32 %v1021, %v1022
  %v1024 = vsel %vm91, %v1010, %v1023
  %1025 = vmatprep.subr.mxu0 0.0
  %1026 = vmatpush1.msra.mxu0 %v1000
  %1027 = vmatprep.subr.mxu0 0.0
  %1028 = vmatpush1.msra.mxu0 %v999
  %1029 = vmatprep.subr.mxu0 0.0
  %1030 = vmatpush1.msra.mxu0 %v998
  %1031 = vmatprep.subr.mxu0 0.0
  %1032 = vmatpush1.msra.mxu0 %v997
  %1033 = vmatprep.subr.mxu0 0.0
  %1034 = vmatpush1.msra.mxu0 %v996
  %1035 = vmatprep.subr.mxu0 0.0
  %1036 = vmatpush1.msra.mxu0 %v995
  %1037 = vmatprep.subr.mxu0 0.0
  %1038 = vmatpush1.msra.mxu0 %v994
  %1039 = vmatprep.subr.mxu0 0.0
  %1040 = vmatpush1.msra.mxu0 %v993
  %1041 = vmatprep.subr.mxu0 0.0
  %1042 = vmatpush1.msra.mxu0 %v992
  %1043 = vmatprep.subr.mxu0 0.0
  %1044 = vmatpush1.msra.mxu0 %v991
  %1045 = vmatprep.subr.mxu0 0.0
  %1046 = vmatpush1.msra.mxu0 %v990
  %1047 = vmatprep.subr.mxu0 0.0
  %1048 = vmatpush1.msra.mxu0 %v989
  %1049 = vmatprep.subr.mxu0 0.0
  %1050 = vmatpush1.msra.mxu0 %v988
  %1051 = vmatprep.subr.mxu0 0.0
  %1052 = vmatpush1.msra.mxu0 %v987
  %1053 = vmatprep.subr.mxu0 0.0
  %1054 = vmatpush1.msra.mxu0 %v986
  %1055 = vmatprep.subr.mxu0 0.0
  %1056 = vmatpush1.msra.mxu0 %v985
  %1057 = vmatprep.subr.mxu0 0.0
  %1058 = vmatpush2.msra.mxu0 0.0
  %1059 = vmatprep.subr.mxu0 0.0
  %1060 = vmatpush2.msra.mxu0 0.0
  %1061 = vmatprep.subr.mxu0 0.0
  %1062 = vmatpush2.msra.mxu0 0.0
  %1063 = vmatprep.subr.mxu0 0.0
  %1064 = vmatpush2.msra.mxu0 0.0
  %1065 = vmatprep.subr.mxu0 0.0
  %1066 = vmatpush2.msra.mxu0 0.0
  %1067 = vmatprep.subr.mxu0 0.0
  %1068 = vmatpush2.msra.mxu0 0.0
  %1069 = vmatprep.subr.mxu0 0.0
  %1070 = vmatpush2.msra.mxu0 0.0
  %1071 = vmatprep.subr.mxu0 0.0
  %1072 = vmatpush2.msra.mxu0 0.0
  %1073 = vmatprep.subr.mxu0 0.0
  %1074 = vmatpush2.msra.mxu0 0.0
  %1075 = vmatprep.subr.mxu0 0.0
  %1076 = vmatpush2.msra.mxu0 0.0
  %1077 = vmatprep.subr.mxu0 0.0
  %1078 = vmatpush2.msra.mxu0 0.0
  %1079 = vmatprep.subr.mxu0 0.0
  %1080 = vmatpush2.msra.mxu0 0.0
  %1081 = vmatprep.subr.mxu0 0.0
  %1082 = vmatpush2.msra.mxu0 0.0
  %1083 = vmatprep.subr.mxu0 0.0
  %1084 = vmatpush2.msra.mxu0 0.0
  %1085 = vmatprep.subr.mxu0 0.0
  %1086 = vmatpush2.msra.mxu0 0.0
  %1087 = vmatprep.subr.mxu0 0.0
  %1088 = vmatpush2.msra.mxu0 0.0
  %1089 = vmatprep.mubr.f32.mxu0 0.0
  %1090 = vmatmul.mubr.f32.gmra.mxu0 %v1024
  %v1091 = vpop.f32.mrf.mxu0
  %v1092 = vadd.f32 0.0, %v1091
  %v1093 = vpop.f32.mrf.mxu0
  %1094 = vdwg.mxu0
  %v1095 = vmul.f32 %v1092, 0.001953125
  %v1096 = vmul.f32 %v1095, %v1095
  %v1098 = vrot.slane %v1096, 7
  %v1100 = vsub.f32 %v1095, %v1098
  %v1101 = vadd.f32 %v1100, 1e-05
  %v1102 = vrsqrt.pop %v1101
  %v1105 = vunpack.c.l.s4 1966171168
  %v1106 = vunpack.c.0.s8 %v1105
  %v1107 = vlaneseq
  %v1108 = vshrl.u32 %v1107, 7
  %v1109 = vsub.s32 %v1106, %v1108
  %v1110 = vrot.slane %v1102, %v1109
  %v1111 = vcombine.high %v1110, %v1110
  %v1113 = vunpack.c.l.s4 1966171168
  %v1114 = vunpack.c.0.s8 %v1113
  %v1115 = vlaneseq
  %v1116 = vshrl.u32 %v1115, 7
  %v1117 = vsub.s32 %v1114, %v1116
  %v1118 = vrot.slane %v1111, %v1117
  %v1120 = vmul.f32 %v983, %v1118
  %v1121 = vmul.f32 %v1095, %v1120
  %v1122 = vsub.f32 %v984, %v1121
  %v1124 = vlaneseq
  %v1125 = vshrl.u32 %v1124, 7
  %v1126 = vsub.s32 0, %v1125
  %v1127 = vrot.slane %v1122, %v1126
  %v1129 = vsel %vm91, %v1120, %v1127
  %vm1130 = vcmask 64512
  %v1132 = vsel %vm1130, %v1129, 0
  %1134 = vmatprep.subr.mxu0 0.0
  %1135 = vmatpush1.msra.mxu0 0.0
  %1136 = vmatprep.subr.mxu0 0.0
  %1137 = vmatpush1.msra.mxu0 0.0
  %1138 = vmatprep.subr.mxu0 0.0
  %1139 = vmatpush1.msra.mxu0 0.0
  %1140 = vmatprep.subr.mxu0 0.0
  %1141 = vmatpush1.msra.mxu0 0.0
  %1142 = vmatprep.subr.mxu0 0.0
  %1143 = vmatpush1.msra.mxu0 0.0
  %1144 = vmatprep.subr.mxu0 0.0
  %1145 = vmatpush1.msra.mxu0 0.0
  %1146 = vmatprep.subr.mxu0 0.0
  %1147 = vmatpush1.msra.mxu0 0.0
  %1148 = vmatprep.subr.mxu0 0.0
  %1149 = vmatpush1.msra.mxu0 0.0
  %1150 = vmatprep.subr.mxu0 0.0
  %1151 = vmatpush1.msra.mxu0 0.0
  %1152 = vmatprep.subr.mxu0 0.0
  %1153 = vmatpush1.msra.mxu0 0.0
  %1154 = vmatprep.subr.mxu0 0.0
  %1155 = vmatpush1.msra.mxu0 0.0
  %1156 = vmatprep.subr.mxu0 0.0
  %1157 = vmatpush1.msra.mxu0 0.0
  %1158 = vmatprep.subr.mxu0 0.0
  %1159 = vmatpush1.msra.mxu0 0.0
  %1160 = vmatprep.subr.mxu0 0.0
  %1161 = vmatpush1.msra.mxu0 0.0
  %1162 = vmatprep.subr.mxu0 0.0
  %1163 = vmatpush1.msra.mxu0 0.0
  %1164 = vmatprep.subr.mxu0 0.0
  %1165 = vmatpush1.msra.mxu0 %v1001
  %1166 = vmatprep.subr.mxu0 0.0
  %1167 = vmatpush2.msra.mxu0 0.0
  %1168 = vmatprep.subr.mxu0 0.0
  %1169 = vmatpush2.msra.mxu0 0.0
  %1170 = vmatprep.subr.mxu0 0.0
  %1171 = vmatpush2.msra.mxu0 0.0
  %1172 = vmatprep.subr.mxu0 0.0
  %1173 = vmatpush2.msra.mxu0 0.0
  %1174 = vmatprep.subr.mxu0 0.0
  %1175 = vmatpush2.msra.mxu0 0.0
  %1176 = vmatprep.subr.mxu0 0.0
  %1177 = vmatpush2.msra.mxu0 0.0
  %1178 = vmatprep.subr.mxu0 0.0
  %1179 = vmatpush2.msra.mxu0 0.0
  %1180 = vmatprep.subr.mxu0 0.0
  %1181 = vmatpush2.msra.mxu0 0.0
  %1182 = vmatprep.subr.mxu0 0.0
  %1183 = vmatpush2.msra.mxu0 0.0
  %1184 = vmatprep.subr.mxu0 0.0
  %1185 = vmatpush2.msra.mxu0 0.0
  %1186 = vmatprep.subr.mxu0 0.0
  %1187 = vmatpush2.msra.mxu0 0.0
  %1188 = vmatprep.subr.mxu0 0.0
  %1189 = vmatpush2.msra.mxu0 0.0
  %1190 = vmatprep.subr.mxu0 0.0
  %1191 = vmatpush2.msra.mxu0 0.0
  %1192 = vmatprep.subr.mxu0 0.0
  %1193 = vmatpush2.msra.mxu0 0.0
  %1194 = vmatprep.subr.mxu0 0.0
  %1195 = vmatpush2.msra.mxu0 0.0
  %1196 = vmatprep.subr.mxu0 0.0
  %1197 = vmatpush2.msra.mxu0 0.0
  %1198 = vmatprep.mubr.f32.mxu0 0.0
  %1199 = vmatmul.mubr.f32.gmra.mxu0 %v1132
  %v1200 = vpop.f32.mrf.mxu0
  %v1201 = vadd.f32 0.0, %v1200
  %v1202 = vpop.f32.mrf.mxu0
  %1203 = vdwg.mxu0
  %v1204 = vlaneseq
  %v1205 = vshrl.u32 %v1204, 7
  %v1206 = vsub.s32 0, %v1205
  %v1207 = vrot.slane %v1201, %v1206
  %v1208 = vmul.f32 %v969, %v1207
  %v1209 = vmul.f32 %v972, %v1207
  %v1210 = vmul.f32 %v977, %v1207
  %v1211 = vmul.f32 %v980, %v1207
  %v1212 = vlaneseq
  %v1213 = vshrl.u32 %v1212, 7
  %v1214 = vsub.s32 1, %v1213
  %v1215 = vrot.slane %v1201, %v1214
  %v1216 = vadd.f32 %v1208, %v1215
  %v1217 = vadd.f32 %v1209, %v1215
  %v1218 = vadd.f32 %v1210, %v1215
  %v1219 = vadd.f32 %v1211, %v1215
  %v1220 = vxor.u32 %v1216, 2147483648
  %v1221 = vxor.u32 %v1217, 2147483648
  %v1222 = vxor.u32 %v1218, 2147483648
  %v1223 = vxor.u32 %v1219, 2147483648
  %v1224 = vmul.f32 %v1220, 1.442695
  %v1225 = vpow.pop %v1224
  %v1226 = vmul.f32 %v1221, 1.442695
  %v1227 = vpow.pop %v1226
  %v1228 = vmul.f32 %v1222, 1.442695
  %v1229 = vpow.pop %v1228
  %v1230 = vmul.f32 %v1223, 1.442695
  %v1231 = vpow.pop %v1230
  %v1232 = vadd.f32 %v1225, 1.0
  %v1233 = vadd.f32 %v1227, 1.0
  %v1234 = vadd.f32 %v1229, 1.0
  %v1235 = vadd.f32 %v1231, 1.0
  %v1236 = vrcp.pop %v1232
  %v1237 = vmul.f32 1.0, %v1236
  %v1238 = vrcp.pop %v1233
  %v1239 = vmul.f32 1.0, %v1238
  %v1240 = vrcp.pop %v1234
  %v1241 = vmul.f32 1.0, %v1240
  %v1242 = vrcp.pop %v1235
  %v1243 = vmul.f32 1.0, %v1242
  %v1244 = vmul.f32 %v1216, %v1237
  %v1245 = vmul.f32 %v1217, %v1239
  %v1246 = vmul.f32 %v1218, %v1241
  %v1247 = vmul.f32 %v1219, %v1243
  %1248 = vst [vmem:[#allocation3] sm:$0x1] 0.0
  %1249 = vst [vmem:[#allocation3 + $0x18] sm:$0x1] 0.0
  %1250 = vst [vmem:[#allocation3 + $0x11] sm:$0x1] 0.0
  %1251 = vst [vmem:[#allocation3 + $0x29] sm:$0x1] 0.0
  %1252 = vst [vmem:[#allocation3 + $0x1] sm:$0xff] %v1244
  %1253 = vst [vmem:[#allocation3 + $0x9] sm:$0xff] %v1245
  %1254 = vst [vmem:[#allocation3 + $0x19] sm:$0xff] %v1246
  %1255 = vst [vmem:[#allocation3 + $0x21] sm:$0xff] %v1247
  %v1256 = vld [vmem:[#allocation3] sm:$0xff]
  %v1257 = vld [vmem:[#allocation3 + $0x8] sm:$0xff]
  %v1258 = vld [vmem:[#allocation3 + $0x18] sm:$0xff]
  %v1259 = vld [vmem:[#allocation3 + $0x20] sm:$0xff]
  %1264 = vrot.lane.b32.xlu0 %v1256, 8
  %v1265 = vpop.permute.xlu0 %1264
  %1266 = vrot.lane.b32.xlu0 %v1257, 8
  %v1267 = vpop.permute.xlu0 %1266
  %1268 = vrot.lane.b32.xlu0 %v1258, 8
  %v1269 = vpop.permute.xlu0 %1268
  %1270 = vrot.lane.b32.xlu0 %v1259, 8
  %v1271 = vpop.permute.xlu0 %1270
  %v1276 = vsel %vm1130, 0.0, %v1265
  %v1277 = vsel %vm1130, 0.0, %v1267
  %v1278 = vsel %vm1130, 0.0, %v1269
  %v1279 = vsel %vm1130, 0.0, %v1271
  %1280 = vrot.lane.b32.xlu0 %v1256, 120
  %v1281 = vpop.permute.xlu0 %1280
  %1282 = vrot.lane.b32.xlu0 %v1257, 120
  %v1283 = vpop.permute.xlu0 %1282
  %1284 = vrot.lane.b32.xlu0 %v1258, 120
  %v1285 = vpop.permute.xlu0 %1284
  %1286 = vrot.lane.b32.xlu0 %v1259, 120
  %v1287 = vpop.permute.xlu0 %1286
  %vm1292 = vcmask 982016
  %v1293 = vsel %vm1292, %v1281, 0.0
  %v1294 = vsel %vm1292, %v1283, 0.0
  %v1295 = vsel %vm1292, %v1285, 0.0
  %v1296 = vsel %vm1292, %v1287, 0.0
  %v1297 = vld [vmem:[#allocation3 + $0x1] sm:$0xff]
  %v1298 = vld [vmem:[#allocation3 + $0x9] sm:$0xff]
  %v1299 = vld [vmem:[#allocation3 + $0x19] sm:$0xff]
  %v1300 = vld [vmem:[#allocation3 + $0x21] sm:$0xff]
  %1305 = vrot.lane.b32.xlu0 %v1297, 8
  %v1306 = vpop.permute.xlu0 %1305
  %1307 = vrot.lane.b32.xlu0 %v1298, 8
  %v1308 = vpop.permute.xlu0 %1307
  %1309 = vrot.lane.b32.xlu0 %v1299, 8
  %v1310 = vpop.permute.xlu0 %1309
  %1311 = vrot.lane.b32.xlu0 %v1300, 8
  %v1312 = vpop.permute.xlu0 %1311
  %v1317 = vsel %vm1130, 0.0, %v1306
  %v1318 = vsel %vm1130, 0.0, %v1308
  %v1319 = vsel %vm1130, 0.0, %v1310
  %v1320 = vsel %vm1130, 0.0, %v1312
  %1321 = vrot.lane.b32.xlu0 %v1297, 120
  %v1322 = vpop.permute.xlu0 %1321
  %1323 = vrot.lane.b32.xlu0 %v1298, 120
  %v1324 = vpop.permute.xlu0 %1323
  %1325 = vrot.lane.b32.xlu0 %v1299, 120
  %v1326 = vpop.permute.xlu0 %1325
  %1327 = vrot.lane.b32.xlu0 %v1300, 120
  %v1328 = vpop.permute.xlu0 %1327
  %v1333 = vsel %vm1292, %v1322, 0.0
  %v1334 = vsel %vm1292, %v1324, 0.0
  %v1335 = vsel %vm1292, %v1326, 0.0
  %v1336 = vsel %vm1292, %v1328, 0.0
  %v1337 = vld [vmem:[#allocation3 + $0x2] sm:$0xff]
  %v1338 = vld [vmem:[#allocation3 + $0xa] sm:$0xff]
  %v1339 = vld [vmem:[#allocation3 + $0x1a] sm:$0xff]
  %v1340 = vld [vmem:[#allocation3 + $0x22] sm:$0xff]
  %1345 = vrot.lane.b32.xlu0 %v1337, 8
  %v1346 = vpop.permute.xlu0 %1345
  %1347 = vrot.lane.b32.xlu0 %v1338, 8
  %v1348 = vpop.permute.xlu0 %1347
  %1349 = vrot.lane.b32.xlu0 %v1339, 8
  %v1350 = vpop.permute.xlu0 %1349
  %1351 = vrot.lane.b32.xlu0 %v1340, 8
  %v1352 = vpop.permute.xlu0 %1351
  %v1357 = vsel %vm1130, 0.0, %v1346
  %v1358 = vsel %vm1130, 0.0, %v1348
  %v1359 = vsel %vm1130, 0.0, %v1350
  %v1360 = vsel %vm1130, 0.0, %v1352
  %1361 = vrot.lane.b32.xlu0 %v1337, 120
  %v1362 = vpop.permute.xlu0 %1361
  %1363 = vrot.lane.b32.xlu0 %v1338, 120
  %v1364 = vpop.permute.xlu0 %1363
  %1365 = vrot.lane.b32.xlu0 %v1339, 120
  %v1366 = vpop.permute.xlu0 %1365
  %1367 = vrot.lane.b32.xlu0 %v1340, 120
  %v1368 = vpop.permute.xlu0 %1367
  %v1373 = vsel %vm1292, %v1362, 0.0
  %v1374 = vsel %vm1292, %v1364, 0.0
  %v1375 = vsel %vm1292, %v1366, 0.0
  %v1376 = vsel %vm1292, %v1368, 0.0
  %v1377 = vpack.c.bf16 %v1277, %v1276
  %v1378 = vpack.c.bf16 %v1257, %v1256
  %v1379 = vpack.c.bf16 %v1294, %v1293
  %v1380 = vpack.c.bf16 %v1318, %v1317
  %v1381 = vpack.c.bf16 %v1298, %v1297
  %v1382 = vpack.c.bf16 %v1334, %v1333
  %v1383 = vpack.c.bf16 %v1358, %v1357
  %v1384 = vpack.c.bf16 %v1338, %v1337
  %v1385 = vpack.c.bf16 %v1374, %v1373
  %v1386 = vpack.c.bf16 %v46, %v45
  %v1387 = vpack.c.bf16 %v1279, %v1278
  %v1388 = vpack.c.bf16 %v1259, %v1258
  %v1389 = vpack.c.bf16 %v1296, %v1295
  %v1390 = vpack.c.bf16 %v1320, %v1319
  %v1391 = vpack.c.bf16 %v1300, %v1299
  %v1392 = vpack.c.bf16 %v1336, %v1335
  %v1393 = vpack.c.bf16 %v1360, %v1359
  %v1394 = vpack.c.bf16 %v1340, %v1339
  %v1395 = vpack.c.bf16 %v1376, %v1375
  %v1396 = vpack.c.bf16 %v48, %v47
  %v1397 = vld [vmem:[%s7] sm:$0xf]
  %v1398 = vld [vmem:[%s7 + $0x4] sm:$0xf]
  %v1399 = vld [vmem:[%s7 + $0x8] sm:$0xf]
  %v1400 = vld [vmem:[%s7 + $0xc] sm:$0xf]
  %v1401 = vld [vmem:[%s7 + $0x10] sm:$0xf]
  %v1402 = vld [vmem:[%s7 + $0x14] sm:$0xf]
  %v1403 = vld [vmem:[%s7 + $0x18] sm:$0xf]
  %v1404 = vld [vmem:[%s7 + $0x1c] sm:$0xf]
  %v1405 = vld [vmem:[%s7 + $0x20] sm:$0xf]
  %v1406 = vld [vmem:[%s7 + $0x24] sm:$0xf]
  %v1407 = vld [vmem:[%s7 + $0x28] sm:$0xf]
  %v1408 = vld [vmem:[%s7 + $0x2c] sm:$0xf]
  %v1409 = vld [vmem:[%s7 + $0x30] sm:$0xf]
  %v1410 = vld [vmem:[%s7 + $0x34] sm:$0xf]
  %v1411 = vld [vmem:[%s7 + $0x38] sm:$0xf]
  %v1412 = vld [vmem:[%s7 + $0x3c] sm:$0xf]
  %v1413 = vld [vmem:[%s7 + $0x40] sm:$0xf]
  %v1414 = vld [vmem:[%s7 + $0x44] sm:$0xf]
  %v1415 = vld [vmem:[%s7 + $0x48] sm:$0xf]
  %v1416 = vld [vmem:[%s7 + $0x4c] sm:$0xf]
  %v1417 = vld [vmem:[%s7 + $0x50] sm:$0xf]
  %v1418 = vld [vmem:[%s7 + $0x54] sm:$0xf]
  %v1419 = vld [vmem:[%s7 + $0x58] sm:$0xf]
  %v1420 = vld [vmem:[%s7 + $0x5c] sm:$0xf]
  %v1421 = vld [vmem:[%s7 + $0x60] sm:$0xf]
  %v1422 = vld [vmem:[%s7 + $0x64] sm:$0xf]
  %v1423 = vld [vmem:[%s7 + $0x68] sm:$0xf]
  %v1424 = vld [vmem:[%s7 + $0x6c] sm:$0xf]
  %v1425 = vld [vmem:[%s7 + $0x70] sm:$0xf]
  %v1426 = vld [vmem:[%s7 + $0x74] sm:$0xf]
  %v1427 = vld [vmem:[%s7 + $0x78] sm:$0xf]
  %v1428 = vld [vmem:[%s7 + $0x7c] sm:$0xf]
  %v1429 = vld [vmem:[%s7 + $0x80] sm:$0xf]
  %v1430 = vld [vmem:[%s7 + $0x84] sm:$0xf]
  %v1431 = vld [vmem:[%s7 + $0x88] sm:$0xf]
  %v1432 = vld [vmem:[%s7 + $0x8c] sm:$0xf]
  %v1433 = vld [vmem:[%s7 + $0x90] sm:$0xf]
  %v1434 = vld [vmem:[%s7 + $0x94] sm:$0xf]
  %v1435 = vld [vmem:[%s7 + $0x98] sm:$0xf]
  %v1436 = vld [vmem:[%s7 + $0x9c] sm:$0xf]
  %v1437 = vld [vmem:[%s7 + $0xa0] sm:$0xf]
  %v1438 = vld [vmem:[%s7 + $0xa4] sm:$0xf]
  %v1439 = vld [vmem:[%s7 + $0xa8] sm:$0xf]
  %v1440 = vld [vmem:[%s7 + $0xac] sm:$0xf]
  %v1441 = vld [vmem:[%s7 + $0xb0] sm:$0xf]
  %v1442 = vld [vmem:[%s7 + $0xb4] sm:$0xf]
  %v1443 = vld [vmem:[%s7 + $0xb8] sm:$0xf]
  %v1444 = vld [vmem:[%s7 + $0xbc] sm:$0xf]
  %v1445 = vld [vmem:[%s7 + $0xc0] sm:$0xf]
  %v1446 = vld [vmem:[%s7 + $0xc4] sm:$0xf]
  %v1447 = vld [vmem:[%s7 + $0xc8] sm:$0xf]
  %v1448 = vld [vmem:[%s7 + $0xcc] sm:$0xf]
  %v1449 = vld [vmem:[%s7 + $0xd0] sm:$0xf]
  %v1450 = vld [vmem:[%s7 + $0xd4] sm:$0xf]
  %v1451 = vld [vmem:[%s7 + $0xd8] sm:$0xf]
  %v1452 = vld [vmem:[%s7 + $0xdc] sm:$0xf]
  %v1453 = vld [vmem:[%s7 + $0xe0] sm:$0xf]
  %v1454 = vld [vmem:[%s7 + $0xe4] sm:$0xf]
  %v1455 = vld [vmem:[%s7 + $0xe8] sm:$0xf]
  %v1456 = vld [vmem:[%s7 + $0xec] sm:$0xf]
  %v1457 = vld [vmem:[%s7 + $0xf0] sm:$0xf]
  %v1458 = vld [vmem:[%s7 + $0xf4] sm:$0xf]
  %v1459 = vld [vmem:[%s7 + $0xf8] sm:$0xf]
  %v1460 = vld [vmem:[%s7 + $0xfc] sm:$0xf]
  %v1461 = vld [vmem:[%s7 + $0x100] sm:$0xf]
  %v1462 = vld [vmem:[%s7 + $0x104] sm:$0xf]
  %v1463 = vld [vmem:[%s7 + $0x108] sm:$0xf]
  %v1464 = vld [vmem:[%s7 + $0x10c] sm:$0xf]
  %v1465 = vld [vmem:[%s7 + $0x110] sm:$0xf]
  %v1466 = vld [vmem:[%s7 + $0x114] sm:$0xf]
  %v1467 = vld [vmem:[%s7 + $0x118] sm:$0xf]
  %v1468 = vld [vmem:[%s7 + $0x11c] sm:$0xf]
  %v1469 = vld [vmem:[%s7 + $0x120] sm:$0xf]
  %v1470 = vld [vmem:[%s7 + $0x124] sm:$0xf]
  %v1471 = vld [vmem:[%s7 + $0x128] sm:$0xf]
  %v1472 = vld [vmem:[%s7 + $0x12c] sm:$0xf]
  %v1473 = vld [vmem:[%s7 + $0x130] sm:$0xf]
  %v1474 = vld [vmem:[%s7 + $0x134] sm:$0xf]
  %v1475 = vld [vmem:[%s7 + $0x138] sm:$0xf]
  %v1476 = vld [vmem:[%s7 + $0x13c] sm:$0xf]
  %v1477 = vld [vmem:[%s7 + $0x140] sm:$0xf]
  %v1478 = vld [vmem:[%s7 + $0x144] sm:$0xf]
  %v1479 = vld [vmem:[%s7 + $0x148] sm:$0xf]
  %v1480 = vld [vmem:[%s7 + $0x14c] sm:$0xf]
  %v1481 = vld [vmem:[%s7 + $0x150] sm:$0xf]
  %v1482 = vld [vmem:[%s7 + $0x154] sm:$0xf]
  %v1483 = vld [vmem:[%s7 + $0x158] sm:$0xf]
  %v1484 = vld [vmem:[%s7 + $0x15c] sm:$0xf]
  %v1485 = vld [vmem:[%s7 + $0x160] sm:$0xf]
  %v1486 = vld [vmem:[%s7 + $0x164] sm:$0xf]
  %v1487 = vld [vmem:[%s7 + $0x168] sm:$0xf]
  %v1488 = vld [vmem:[%s7 + $0x16c] sm:$0xf]
  %v1489 = vld [vmem:[%s7 + $0x170] sm:$0xf]
  %v1490 = vld [vmem:[%s7 + $0x174] sm:$0xf]
  %v1491 = vld [vmem:[%s7 + $0x178] sm:$0xf]
  %v1492 = vld [vmem:[%s7 + $0x17c] sm:$0xf]
  %v1493 = vld [vmem:[%s7 + $0x180] sm:$0xf]
  %v1494 = vld [vmem:[%s7 + $0x184] sm:$0xf]
  %v1495 = vld [vmem:[%s7 + $0x188] sm:$0xf]
  %v1496 = vld [vmem:[%s7 + $0x18c] sm:$0xf]
  %v1497 = vld [vmem:[%s7 + $0x190] sm:$0xf]
  %v1498 = vld [vmem:[%s7 + $0x194] sm:$0xf]
  %v1499 = vld [vmem:[%s7 + $0x198] sm:$0xf]
  %v1500 = vld [vmem:[%s7 + $0x19c] sm:$0xf]
  %v1501 = vld [vmem:[%s7 + $0x1a0] sm:$0xf]
  %v1502 = vld [vmem:[%s7 + $0x1a4] sm:$0xf]
  %v1503 = vld [vmem:[%s7 + $0x1a8] sm:$0xf]
  %v1504 = vld [vmem:[%s7 + $0x1ac] sm:$0xf]
  %v1505 = vld [vmem:[%s7 + $0x1b0] sm:$0xf]
  %v1506 = vld [vmem:[%s7 + $0x1b4] sm:$0xf]
  %v1507 = vld [vmem:[%s7 + $0x1b8] sm:$0xf]
  %v1508 = vld [vmem:[%s7 + $0x1bc] sm:$0xf]
  %v1509 = vld [vmem:[%s7 + $0x1c0] sm:$0xf]
  %v1510 = vld [vmem:[%s7 + $0x1c4] sm:$0xf]
  %v1511 = vld [vmem:[%s7 + $0x1c8] sm:$0xf]
  %v1512 = vld [vmem:[%s7 + $0x1cc] sm:$0xf]
  %v1513 = vld [vmem:[%s7 + $0x1d0] sm:$0xf]
  %v1514 = vld [vmem:[%s7 + $0x1d4] sm:$0xf]
  %v1515 = vld [vmem:[%s7 + $0x1d8] sm:$0xf]
  %v1516 = vld [vmem:[%s7 + $0x1dc] sm:$0xf]
  %v1517 = vld [vmem:[%s7 + $0x1e0] sm:$0xf]
  %v1518 = vld [vmem:[%s7 + $0x1e4] sm:$0xf]
  %v1519 = vld [vmem:[%s7 + $0x1e8] sm:$0xf]
  %v1520 = vld [vmem:[%s7 + $0x1ec] sm:$0xf]
  %v1521 = vld [vmem:[%s7 + $0x1f0] sm:$0xf]
  %v1522 = vld [vmem:[%s7 + $0x1f4] sm:$0xf]
  %v1523 = vld [vmem:[%s7 + $0x1f8] sm:$0xf]
  %v1524 = vld [vmem:[%s7 + $0x1fc] sm:$0xf]
  %v1525 = vld [vmem:[%s7 + $0x200] sm:$0xf]
  %v1526 = vld [vmem:[%s7 + $0x204] sm:$0xf]
  %v1527 = vld [vmem:[%s7 + $0x208] sm:$0xf]
  %v1528 = vld [vmem:[%s7 + $0x20c] sm:$0xf]
  %v1529 = vld [vmem:[%s7 + $0x210] sm:$0xf]
  %v1530 = vld [vmem:[%s7 + $0x214] sm:$0xf]
  %v1531 = vld [vmem:[%s7 + $0x218] sm:$0xf]
  %v1532 = vld [vmem:[%s7 + $0x21c] sm:$0xf]
  %v1533 = vld [vmem:[%s7 + $0x220] sm:$0xf]
  %v1534 = vld [vmem:[%s7 + $0x224] sm:$0xf]
  %v1535 = vld [vmem:[%s7 + $0x228] sm:$0xf]
  %v1536 = vld [vmem:[%s7 + $0x22c] sm:$0xf]
  %v1537 = vld [vmem:[%s7 + $0x230] sm:$0xf]
  %v1538 = vld [vmem:[%s7 + $0x234] sm:$0xf]
  %v1539 = vld [vmem:[%s7 + $0x238] sm:$0xf]
  %v1540 = vld [vmem:[%s7 + $0x23c] sm:$0xf]
  %v1541 = vld [vmem:[%s7 + $0x240] sm:$0xf]
  %v1542 = vld [vmem:[%s7 + $0x244] sm:$0xf]
  %v1543 = vld [vmem:[%s7 + $0x248] sm:$0xf]
  %v1544 = vld [vmem:[%s7 + $0x24c] sm:$0xf]
  %v1545 = vld [vmem:[%s7 + $0x250] sm:$0xf]
  %v1546 = vld [vmem:[%s7 + $0x254] sm:$0xf]
  %v1547 = vld [vmem:[%s7 + $0x258] sm:$0xf]
  %v1548 = vld [vmem:[%s7 + $0x25c] sm:$0xf]
  %v1549 = vld [vmem:[%s8] sm:$0x1]
  %v1551 = vlaneseq
  %v1552 = vshrl.u32 %v1551, 7
  %v1553 = vsub.s32 0, %v1552
  %v1554 = vrot.slane %v1549, %v1553
  %v1708 = vunpack.c.l.b16 %v1397
  %v1709 = vunpack.c.l.b16 %v1398
  %v1710 = vunpack.c.l.b16 %v1399
  %v1711 = vunpack.c.l.b16 %v1400
  %v1712 = vunpack.c.l.b16 %v1401
  %v1713 = vunpack.c.l.b16 %v1402
  %v1714 = vunpack.c.l.b16 %v1403
  %v1715 = vunpack.c.l.b16 %v1404
  %v1716 = vunpack.c.l.b16 %v1405
  %v1717 = vunpack.c.l.b16 %v1406
  %v1718 = vunpack.c.l.b16 %v1407
  %v1719 = vunpack.c.l.b16 %v1408
  %v1720 = vunpack.c.l.b16 %v1409
  %v1721 = vunpack.c.l.b16 %v1410
  %v1722 = vunpack.c.l.b16 %v1411
  %v1723 = vunpack.c.l.b16 %v1412
  %v1724 = vunpack.c.l.b16 %v1413
  %v1725 = vunpack.c.l.b16 %v1414
  %v1726 = vunpack.c.l.b16 %v1415
  %v1727 = vunpack.c.l.b16 %v1416
  %v1728 = vunpack.c.l.b16 %v1417
  %v1729 = vunpack.c.l.b16 %v1418
  %v1730 = vunpack.c.l.b16 %v1419
  %v1731 = vunpack.c.l.b16 %v1420
  %v1732 = vunpack.c.l.b16 %v1421
  %v1733 = vunpack.c.l.b16 %v1422
  %v1734 = vunpack.c.l.b16 %v1423
  %v1735 = vunpack.c.l.b16 %v1424
  %v1736 = vunpack.c.l.b16 %v1425
  %v1737 = vunpack.c.l.b16 %v1426
  %v1738 = vunpack.c.l.b16 %v1427
  %v1739 = vunpack.c.l.b16 %v1428
  %v1740 = vunpack.c.l.b16 %v1429
  %v1741 = vunpack.c.l.b16 %v1430
  %v1742 = vunpack.c.l.b16 %v1431
  %v1743 = vunpack.c.l.b16 %v1432
  %v1744 = vunpack.c.l.b16 %v1433
  %v1745 = vunpack.c.l.b16 %v1434
  %v1746 = vunpack.c.l.b16 %v1435
  %v1747 = vunpack.c.l.b16 %v1436
  %v1748 = vunpack.c.l.b16 %v1437
  %v1749 = vunpack.c.l.b16 %v1438
  %v1750 = vunpack.c.l.b16 %v1439
  %v1751 = vunpack.c.l.b16 %v1440
  %v1752 = vunpack.c.l.b16 %v1441
  %v1753 = vunpack.c.l.b16 %v1442
  %v1754 = vunpack.c.l.b16 %v1443
  %v1755 = vunpack.c.l.b16 %v1444
  %v1756 = vunpack.c.l.b16 %v1445
  %v1757 = vunpack.c.l.b16 %v1446
  %v1758 = vunpack.c.l.b16 %v1447
  %v1759 = vunpack.c.l.b16 %v1448
  %v1760 = vunpack.c.l.b16 %v1449
  %v1761 = vunpack.c.l.b16 %v1450
  %v1762 = vunpack.c.l.b16 %v1451
  %v1763 = vunpack.c.l.b16 %v1452
  %v1764 = vunpack.c.l.b16 %v1453
  %v1765 = vunpack.c.l.b16 %v1454
  %v1766 = vunpack.c.l.b16 %v1455
  %v1767 = vunpack.c.l.b16 %v1456
  %v1768 = vunpack.c.l.b16 %v1457
  %v1769 = vunpack.c.l.b16 %v1458
  %v1770 = vunpack.c.l.b16 %v1459
  %v1771 = vunpack.c.l.b16 %v1460
  %v1772 = vunpack.c.l.b16 %v1461
  %v1773 = vunpack.c.l.b16 %v1462
  %v1774 = vunpack.c.l.b16 %v1463
  %v1775 = vunpack.c.l.b16 %v1464
  %v1776 = vunpack.c.l.b16 %v1465
  %v1777 = vunpack.c.l.b16 %v1466
  %v1778 = vunpack.c.l.b16 %v1467
  %v1779 = vunpack.c.l.b16 %v1468
  %v1780 = vunpack.c.l.b16 %v1469
  %v1781 = vunpack.c.l.b16 %v1470
  %v1782 = vunpack.c.l.b16 %v1471
  %v1783 = vunpack.c.l.b16 %v1472
  %v1784 = vunpack.c.l.b16 %v1473
  %v1785 = vunpack.c.l.b16 %v1474
  %v1786 = vunpack.c.l.b16 %v1475
  %v1787 = vunpack.c.l.b16 %v1476
  %v1788 = vunpack.c.l.b16 %v1477
  %v1789 = vunpack.c.l.b16 %v1478
  %v1790 = vunpack.c.l.b16 %v1479
  %v1791 = vunpack.c.l.b16 %v1480
  %v1792 = vunpack.c.l.b16 %v1481
  %v1793 = vunpack.c.l.b16 %v1482
  %v1794 = vunpack.c.l.b16 %v1483
  %v1795 = vunpack.c.l.b16 %v1484
  %v1796 = vunpack.c.l.b16 %v1485
  %v1797 = vunpack.c.l.b16 %v1486
  %v1798 = vunpack.c.l.b16 %v1487
  %v1799 = vunpack.c.l.b16 %v1488
  %v1800 = vunpack.c.l.b16 %v1489
  %v1801 = vunpack.c.l.b16 %v1490
  %v1802 = vunpack.c.l.b16 %v1491
  %v1803 = vunpack.c.l.b16 %v1492
  %v1804 = vunpack.c.l.b16 %v1493
  %v1805 = vunpack.c.l.b16 %v1494
  %v1806 = vunpack.c.l.b16 %v1495
  %v1807 = vunpack.c.l.b16 %v1496
  %v1808 = vunpack.c.l.b16 %v1497
  %v1809 = vunpack.c.l.b16 %v1498
  %v1810 = vunpack.c.l.b16 %v1499
  %v1811 = vunpack.c.l.b16 %v1500
  %v1812 = vunpack.c.l.b16 %v1501
  %v1813 = vunpack.c.l.b16 %v1502
  %v1814 = vunpack.c.l.b16 %v1503
  %v1815 = vunpack.c.l.b16 %v1504
  %v1816 = vunpack.c.l.b16 %v1505
  %v1817 = vunpack.c.l.b16 %v1506
  %v1818 = vunpack.c.l.b16 %v1507
  %v1819 = vunpack.c.l.b16 %v1508
  %v1820 = vunpack.c.l.b16 %v1509
  %v1821 = vunpack.c.l.b16 %v1510
  %v1822 = vunpack.c.l.b16 %v1511
  %v1823 = vunpack.c.l.b16 %v1512
  %v1824 = vunpack.c.l.b16 %v1513
  %v1825 = vunpack.c.l.b16 %v1514
  %v1826 = vunpack.c.l.b16 %v1515
  %v1827 = vunpack.c.l.b16 %v1516
  %v1828 = vunpack.c.l.b16 %v1517
  %v1829 = vunpack.c.l.b16 %v1518
  %v1830 = vunpack.c.l.b16 %v1519
  %v1831 = vunpack.c.l.b16 %v1520
  %v1832 = vunpack.c.l.b16 %v1521
  %v1833 = vunpack.c.l.b16 %v1522
  %v1834 = vunpack.c.l.b16 %v1523
  %v1835 = vunpack.c.l.b16 %v1524
  %v1836 = vunpack.c.l.b16 %v1525
  %v1837 = vunpack.c.l.b16 %v1526
  %v1838 = vunpack.c.l.b16 %v1527
  %v1839 = vunpack.c.l.b16 %v1528
  %v1840 = vunpack.c.l.b16 %v1529
  %v1841 = vunpack.c.l.b16 %v1530
  %v1842 = vunpack.c.l.b16 %v1531
  %v1843 = vunpack.c.l.b16 %v1532
  %v1844 = vunpack.c.l.b16 %v1533
  %v1845 = vunpack.c.l.b16 %v1534
  %v1846 = vunpack.c.l.b16 %v1535
  %v1847 = vunpack.c.l.b16 %v1536
  %v1848 = vunpack.c.l.b16 %v1537
  %v1849 = vunpack.c.l.b16 %v1538
  %v1850 = vunpack.c.l.b16 %v1539
  %v1851 = vunpack.c.l.b16 %v1540
  %v1852 = vunpack.c.l.b16 %v1541
  %v1853 = vunpack.c.l.b16 %v1542
  %v1854 = vunpack.c.l.b16 %v1543
  %v1855 = vunpack.c.l.b16 %v1544
  %v1856 = vunpack.c.l.b16 %v1545
  %v1857 = vunpack.c.l.b16 %v1546
  %v1858 = vunpack.c.l.b16 %v1547
  %v1859 = vunpack.c.l.b16 %v1548
  %v1860 = vpack.c.b16 %v1709, %v1708
  %v1861 = vpack.c.b16 %v1711, %v1710
  %v1862 = vpack.c.b16 %v1713, %v1712
  %v1863 = vpack.c.b16 %v1715, %v1714
  %v1864 = vpack.c.b16 %v1717, %v1716
  %v1865 = vpack.c.b16 %v1719, %v1718
  %v1866 = vpack.c.b16 %v1721, %v1720
  %v1867 = vpack.c.b16 %v1723, %v1722
  %v1868 = vpack.c.b16 %v1725, %v1724
  %v1869 = vpack.c.b16 %v1727, %v1726
  %v1870 = vpack.c.b16 %v1729, %v1728
  %v1871 = vpack.c.b16 %v1731, %v1730
  %v1872 = vpack.c.b16 %v1733, %v1732
  %v1873 = vpack.c.b16 %v1735, %v1734
  %v1874 = vpack.c.b16 %v1737, %v1736
  %v1875 = vpack.c.b16 %v1739, %v1738
  %v1876 = vpack.c.b16 %v1741, %v1740
  %v1877 = vpack.c.b16 %v1743, %v1742
  %v1878 = vpack.c.b16 %v1745, %v1744
  %v1879 = vpack.c.b16 %v1747, %v1746
  %v1880 = vpack.c.b16 %v1749, %v1748
  %v1881 = vpack.c.b16 %v1751, %v1750
  %v1882 = vpack.c.b16 %v1753, %v1752
  %v1883 = vpack.c.b16 %v1755, %v1754
  %v1884 = vpack.c.b16 %v1757, %v1756
  %v1885 = vpack.c.b16 %v1759, %v1758
  %v1886 = vpack.c.b16 %v1761, %v1760
  %v1887 = vpack.c.b16 %v1763, %v1762
  %v1888 = vpack.c.b16 %v1765, %v1764
  %v1889 = vpack.c.b16 %v1767, %v1766
  %v1890 = vpack.c.b16 %v1769, %v1768
  %v1891 = vpack.c.b16 %v1771, %v1770
  %v1892 = vpack.c.b16 %v1773, %v1772
  %v1893 = vpack.c.b16 %v1775, %v1774
  %v1894 = vpack.c.b16 %v1777, %v1776
  %v1895 = vpack.c.b16 %v1779, %v1778
  %v1896 = vpack.c.b16 %v1781, %v1780
  %v1897 = vpack.c.b16 %v1783, %v1782
  %v1898 = vpack.c.b16 %v1785, %v1784
  %v1899 = vpack.c.b16 %v1787, %v1786
  %v1900 = vpack.c.b16 %v1789, %v1788
  %v1901 = vpack.c.b16 %v1791, %v1790
  %v1902 = vpack.c.b16 %v1793, %v1792
  %v1903 = vpack.c.b16 %v1795, %v1794
  %v1904 = vpack.c.b16 %v1797, %v1796
  %v1905 = vpack.c.b16 %v1799, %v1798
  %v1906 = vpack.c.b16 %v1801, %v1800
  %v1907 = vpack.c.b16 %v1803, %v1802
  %v1908 = vpack.c.b16 %v1805, %v1804
  %v1909 = vpack.c.b16 %v1807, %v1806
  %v1910 = vpack.c.b16 %v1809, %v1808
  %v1911 = vpack.c.b16 %v1811, %v1810
  %v1912 = vpack.c.b16 %v1813, %v1812
  %v1913 = vpack.c.b16 %v1815, %v1814
  %v1914 = vpack.c.b16 %v1817, %v1816
  %v1915 = vpack.c.b16 %v1819, %v1818
  %v1916 = vpack.c.b16 %v1821, %v1820
  %v1917 = vpack.c.b16 %v1823, %v1822
  %v1918 = vpack.c.b16 %v1825, %v1824
  %v1919 = vpack.c.b16 %v1827, %v1826
  %v1920 = vpack.c.b16 %v1829, %v1828
  %v1921 = vpack.c.b16 %v1831, %v1830
  %v1922 = vpack.c.b16 %v1833, %v1832
  %v1923 = vpack.c.b16 %v1835, %v1834
  %v1924 = vpack.c.b16 %v1837, %v1836
  %v1925 = vpack.c.b16 %v1839, %v1838
  %v1926 = vpack.c.b16 %v1841, %v1840
  %v1927 = vpack.c.b16 %v1843, %v1842
  %v1928 = vpack.c.b16 %v1845, %v1844
  %v1929 = vpack.c.b16 %v1847, %v1846
  %v1930 = vpack.c.b16 %v1849, %v1848
  %v1931 = vpack.c.b16 %v1851, %v1850
  %v1932 = vpack.c.b16 %v1853, %v1852
  %v1933 = vpack.c.b16 %v1855, %v1854
  %v1934 = vpack.c.b16 %v1857, %v1856
  %v1935 = vpack.c.b16 %v1859, %v1858
  %v2013 = vsel %vm60, %v1386, 0
  %v2016 = vsel %vm60, %v1396, 0
  %2018 = vmatprep.subr.bf16.mxu0 0
  %2019 = vmatpush1.bf16.msra.mxu0 %v1867
  %2020 = vmatprep.subr.bf16.mxu0 0
  %2021 = vmatpush1.bf16.msra.mxu0 %v1866
  %2022 = vmatprep.subr.bf16.mxu0 0
  %2023 = vmatpush1.bf16.msra.mxu0 %v1865
  %2024 = vmatprep.subr.bf16.mxu0 0
  %2025 = vmatpush1.bf16.msra.mxu0 %v1864
  %2026 = vmatprep.subr.bf16.mxu0 0
  %2027 = vmatpush1.bf16.msra.mxu0 %v1863
  %2028 = vmatprep.subr.bf16.mxu0 0
  %2029 = vmatpush1.bf16.msra.mxu0 %v1862
  %2030 = vmatprep.subr.bf16.mxu0 0
  %2031 = vmatpush1.bf16.msra.mxu0 %v1861
  %2032 = vmatprep.subr.bf16.mxu0 0
  %2033 = vmatpush1.bf16.msra.mxu0 %v1860
  %2034 = vmatprep.subr.bf16.mxu0 0
  %2035 = vmatpush2.bf16.msra.mxu0 %v1875
  %2036 = vmatprep.subr.bf16.mxu0 0
  %2037 = vmatpush2.bf16.msra.mxu0 %v1874
  %2038 = vmatprep.subr.bf16.mxu0 0
  %2039 = vmatpush2.bf16.msra.mxu0 %v1873
  %2040 = vmatprep.subr.bf16.mxu0 0
  %2041 = vmatpush2.bf16.msra.mxu0 %v1872
  %2042 = vmatprep.subr.bf16.mxu0 0
  %2043 = vmatpush2.bf16.msra.mxu0 %v1871
  %2044 = vmatprep.subr.bf16.mxu0 0
  %2045 = vmatpush2.bf16.msra.mxu0 %v1870
  %2046 = vmatprep.subr.bf16.mxu0 0
  %2047 = vmatpush2.bf16.msra.mxu0 %v1869
  %2048 = vmatprep.subr.bf16.mxu0 0
  %2049 = vmatpush2.bf16.msra.mxu0 %v1868
  %2050 = vmatprep.mubr.bf16.mxu0 %v1378
  %2051 = vmatmul.mubr.bf16.gmra.mxu0 %v1377
  %v2052 = vpop.f32.mrf.mxu0
  %v2053 = vadd.f32 %v1554, %v2052
  %v2054 = vpop.f32.mrf.mxu0
  %v2055 = vpop.f32.mrf.mxu0
  %v2056 = vadd.f32 %v1554, %v2055
  %v2057 = vpop.f32.mrf.mxu0
  %2058 = vmatprep.mubr.bf16.mxu0 %v1388
  %2059 = vmatmul.mubr.bf16.gmra.mxu0 %v1387
  %v2060 = vpop.f32.mrf.mxu0
  %v2061 = vadd.f32 %v1554, %v2060
  %v2062 = vpop.f32.mrf.mxu0
  %v2063 = vpop.f32.mrf.mxu0
  %v2064 = vadd.f32 %v1554, %v2063
  %v2065 = vpop.f32.mrf.mxu0
  %2066 = vdwg.mxu0
  %2067 = vmatprep.subr.bf16.mxu0 0
  %2068 = vmatpush1.bf16.msra.mxu0 %v1883
  %2069 = vmatprep.subr.bf16.mxu0 0
  %2070 = vmatpush1.bf16.msra.mxu0 %v1882
  %2071 = vmatprep.subr.bf16.mxu0 0
  %2072 = vmatpush1.bf16.msra.mxu0 %v1881
  %2073 = vmatprep.subr.bf16.mxu0 0
  %2074 = vmatpush1.bf16.msra.mxu0 %v1880
  %2075 = vmatprep.subr.bf16.mxu0 0
  %2076 = vmatpush1.bf16.msra.mxu0 %v1879
  %2077 = vmatprep.subr.bf16.mxu0 0
  %2078 = vmatpush1.bf16.msra.mxu0 %v1878
  %2079 = vmatprep.subr.bf16.mxu0 0
  %2080 = vmatpush1.bf16.msra.mxu0 %v1877
  %2081 = vmatprep.subr.bf16.mxu0 0
  %2082 = vmatpush1.bf16.msra.mxu0 %v1876
  %2083 = vmatprep.subr.bf16.mxu0 0
  %2084 = vmatpush2.bf16.msra.mxu0 %v1891
  %2085 = vmatprep.subr.bf16.mxu0 0
  %2086 = vmatpush2.bf16.msra.mxu0 %v1890
  %2087 = vmatprep.subr.bf16.mxu0 0
  %2088 = vmatpush2.bf16.msra.mxu0 %v1889
  %2089 = vmatprep.subr.bf16.mxu0 0
  %2090 = vmatpush2.bf16.msra.mxu0 %v1888
  %2091 = vmatprep.subr.bf16.mxu0 0
  %2092 = vmatpush2.bf16.msra.mxu0 %v1887
  %2093 = vmatprep.subr.bf16.mxu0 0
  %2094 = vmatpush2.bf16.msra.mxu0 %v1886
  %2095 = vmatprep.subr.bf16.mxu0 0
  %2096 = vmatpush2.bf16.msra.mxu0 %v1885
  %2097 = vmatprep.subr.bf16.mxu0 0
  %2098 = vmatpush2.bf16.msra.mxu0 %v1884
  %2099 = vmatprep.mubr.bf16.mxu0 %v1380
  %2100 = vmatmul.mubr.bf16.gmra.mxu0 %v1379
  %v2101 = vpop.f32.mrf.mxu0
  %v2102 = vadd.f32 %v2053, %v2101
  %v2103 = vpop.f32.mrf.mxu0
  %v2104 = vpop.f32.mrf.mxu0
  %v2105 = vadd.f32 %v2056, %v2104
  %v2106 = vpop.f32.mrf.mxu0
  %2107 = vmatprep.mubr.bf16.mxu0 %v1390
  %2108 = vmatmul.mubr.bf16.gmra.mxu0 %v1389
  %v2109 = vpop.f32.mrf.mxu0
  %v2110 = vadd.f32 %v2061, %v2109
  %v2111 = vpop.f32.mrf.mxu0
  %v2112 = vpop.f32.mrf.mxu0
  %v2113 = vadd.f32 %v2064, %v2112
  %v2114 = vpop.f32.mrf.mxu0
  %2115 = vdwg.mxu0
  %2116 = vmatprep.subr.bf16.mxu0 0
  %2117 = vmatpush1.bf16.msra.mxu0 %v1899
  %2118 = vmatprep.subr.bf16.mxu0 0
  %2119 = vmatpush1.bf16.msra.mxu0 %v1898
  %2120 = vmatprep.subr.bf16.mxu0 0
  %2121 = vmatpush1.bf16.msra.mxu0 %v1897
  %2122 = vmatprep.subr.bf16.mxu0 0
  %2123 = vmatpush1.bf16.msra.mxu0 %v1896
  %2124 = vmatprep.subr.bf16.mxu0 0
  %2125 = vmatpush1.bf16.msra.mxu0 %v1895
  %2126 = vmatprep.subr.bf16.mxu0 0
  %2127 = vmatpush1.bf16.msra.mxu0 %v1894
  %2128 = vmatprep.subr.bf16.mxu0 0
  %2129 = vmatpush1.bf16.msra.mxu0 %v1893
  %2130 = vmatprep.subr.bf16.mxu0 0
  %2131 = vmatpush1.bf16.msra.mxu0 %v1892
  %2132 = vmatprep.subr.bf16.mxu0 0
  %2133 = vmatpush2.bf16.msra.mxu0 %v1907
  %2134 = vmatprep.subr.bf16.mxu0 0
  %2135 = vmatpush2.bf16.msra.mxu0 %v1906
  %2136 = vmatprep.subr.bf16.mxu0 0
  %2137 = vmatpush2.bf16.msra.mxu0 %v1905
  %2138 = vmatprep.subr.bf16.mxu0 0
  %2139 = vmatpush2.bf16.msra.mxu0 %v1904
  %2140 = vmatprep.subr.bf16.mxu0 0
  %2141 = vmatpush2.bf16.msra.mxu0 %v1903
  %2142 = vmatprep.subr.bf16.mxu0 0
  %2143 = vmatpush2.bf16.msra.mxu0 %v1902
  %2144 = vmatprep.subr.bf16.mxu0 0
  %2145 = vmatpush2.bf16.msra.mxu0 %v1901
  %2146 = vmatprep.subr.bf16.mxu0 0
  %2147 = vmatpush2.bf16.msra.mxu0 %v1900
  %2148 = vmatprep.mubr.bf16.mxu0 %v1382
  %2149 = vmatmul.mubr.bf16.gmra.mxu0 %v1381
  %v2150 = vpop.f32.mrf.mxu0
  %v2151 = vadd.f32 %v2102, %v2150
  %v2152 = vpop.f32.mrf.mxu0
  %v2153 = vpop.f32.mrf.mxu0
  %v2154 = vadd.f32 %v2105, %v2153
  %v2155 = vpop.f32.mrf.mxu0
  %2156 = vmatprep.mubr.bf16.mxu0 %v1392
  %2157 = vmatmul.mubr.bf16.gmra.mxu0 %v1391
  %v2158 = vpop.f32.mrf.mxu0
  %v2159 = vadd.f32 %v2110, %v2158
  %v2160 = vpop.f32.mrf.mxu0
  %v2161 = vpop.f32.mrf.mxu0
  %v2162 = vadd.f32 %v2113, %v2161
  %v2163 = vpop.f32.mrf.mxu0
  %2164 = vdwg.mxu0
  %2165 = vmatprep.subr.bf16.mxu0 0
  %2166 = vmatpush1.bf16.msra.mxu0 %v1915
  %2167 = vmatprep.subr.bf16.mxu0 0
  %2168 = vmatpush1.bf16.msra.mxu0 %v1914
  %2169 = vmatprep.subr.bf16.mxu0 0
  %2170 = vmatpush1.bf16.msra.mxu0 %v1913
  %2171 = vmatprep.subr.bf16.mxu0 0
  %2172 = vmatpush1.bf16.msra.mxu0 %v1912
  %2173 = vmatprep.subr.bf16.mxu0 0
  %2174 = vmatpush1.bf16.msra.mxu0 %v1911
  %2175 = vmatprep.subr.bf16.mxu0 0
  %2176 = vmatpush1.bf16.msra.mxu0 %v1910
  %2177 = vmatprep.subr.bf16.mxu0 0
  %2178 = vmatpush1.bf16.msra.mxu0 %v1909
  %2179 = vmatprep.subr.bf16.mxu0 0
  %2180 = vmatpush1.bf16.msra.mxu0 %v1908
  %2181 = vmatprep.subr.bf16.mxu0 0
  %2182 = vmatpush2.bf16.msra.mxu0 %v1923
  %2183 = vmatprep.subr.bf16.mxu0 0
  %2184 = vmatpush2.bf16.msra.mxu0 %v1922
  %2185 = vmatprep.subr.bf16.mxu0 0
  %2186 = vmatpush2.bf16.msra.mxu0 %v1921
  %2187 = vmatprep.subr.bf16.mxu0 0
  %2188 = vmatpush2.bf16.msra.mxu0 %v1920
  %2189 = vmatprep.subr.bf16.mxu0 0
  %2190 = vmatpush2.bf16.msra.mxu0 %v1919
  %2191 = vmatprep.subr.bf16.mxu0 0
  %2192 = vmatpush2.bf16.msra.mxu0 %v1918
  %2193 = vmatprep.subr.bf16.mxu0 0
  %2194 = vmatpush2.bf16.msra.mxu0 %v1917
  %2195 = vmatprep.subr.bf16.mxu0 0
  %2196 = vmatpush2.bf16.msra.mxu0 %v1916
  %2197 = vmatprep.mubr.bf16.mxu0 %v1384
  %2198 = vmatmul.mubr.bf16.gmra.mxu0 %v1383
  %v2199 = vpop.f32.mrf.mxu0
  %v2200 = vadd.f32 %v2151, %v2199
  %v2201 = vpop.f32.mrf.mxu0
  %v2202 = vpop.f32.mrf.mxu0
  %v2203 = vadd.f32 %v2154, %v2202
  %v2204 = vpop.f32.mrf.mxu0
  %2205 = vmatprep.mubr.bf16.mxu0 %v1394
  %2206 = vmatmul.mubr.bf16.gmra.mxu0 %v1393
  %v2207 = vpop.f32.mrf.mxu0
  %v2208 = vadd.f32 %v2159, %v2207
  %v2209 = vpop.f32.mrf.mxu0
  %v2210 = vpop.f32.mrf.mxu0
  %v2211 = vadd.f32 %v2162, %v2210
  %v2212 = vpop.f32.mrf.mxu0
  %2213 = vdwg.mxu0
  %2214 = vmatprep.subr.bf16.mxu0 0
  %2215 = vmatpush1.bf16.msra.mxu0 %v1931
  %2216 = vmatprep.subr.bf16.mxu0 0
  %2217 = vmatpush1.bf16.msra.mxu0 %v1930
  %2218 = vmatprep.subr.bf16.mxu0 0
  %2219 = vmatpush1.bf16.msra.mxu0 %v1929
  %2220 = vmatprep.subr.bf16.mxu0 0
  %2221 = vmatpush1.bf16.msra.mxu0 %v1928
  %2222 = vmatprep.subr.bf16.mxu0 0
  %2223 = vmatpush1.bf16.msra.mxu0 %v1927
  %2224 = vmatprep.subr.bf16.mxu0 0
  %2225 = vmatpush1.bf16.msra.mxu0 %v1926
  %2226 = vmatprep.subr.bf16.mxu0 0
  %2227 = vmatpush1.bf16.msra.mxu0 %v1925
  %2228 = vmatprep.subr.bf16.mxu0 0
  %2229 = vmatpush1.bf16.msra.mxu0 %v1924
  %2230 = vmatprep.subr.bf16.mxu0 0
  %2231 = vmatpush2.bf16.msra.mxu0 0
  %2232 = vmatprep.subr.bf16.mxu0 0
  %2233 = vmatpush2.bf16.msra.mxu0 0
  %2234 = vmatprep.subr.bf16.mxu0 0
  %2235 = vmatpush2.bf16.msra.mxu0 0
  %2236 = vmatprep.subr.bf16.mxu0 0
  %2237 = vmatpush2.bf16.msra.mxu0 0
  %2238 = vmatprep.subr.bf16.mxu0 0
  %2239 = vmatpush2.bf16.msra.mxu0 %v1935
  %2240 = vmatprep.subr.bf16.mxu0 0
  %2241 = vmatpush2.bf16.msra.mxu0 %v1934
  %2242 = vmatprep.subr.bf16.mxu0 0
  %2243 = vmatpush2.bf16.msra.mxu0 %v1933
  %2244 = vmatprep.subr.bf16.mxu0 0
  %2245 = vmatpush2.bf16.msra.mxu0 %v1932
  %2246 = vmatprep.mubr.bf16.mxu0 %v2013
  %2247 = vmatmul.mubr.bf16.gmra.mxu0 %v1385
  %v2248 = vpop.f32.mrf.mxu0
  %v2249 = vadd.f32 %v2200, %v2248
  %v2250 = vpop.f32.mrf.mxu0
  %v2251 = vpop.f32.mrf.mxu0
  %v2252 = vadd.f32 %v2203, %v2251
  %v2253 = vpop.f32.mrf.mxu0
  %2254 = vmatprep.mubr.bf16.mxu0 %v2016
  %2255 = vmatmul.mubr.bf16.gmra.mxu0 %v1395
  %v2256 = vpop.f32.mrf.mxu0
  %v2257 = vadd.f32 %v2208, %v2256
  %v2258 = vpop.f32.mrf.mxu0
  %v2259 = vpop.f32.mrf.mxu0
  %v2260 = vadd.f32 %v2211, %v2259
  %v2261 = vpop.f32.mrf.mxu0
  %2262 = vdwg.mxu0
  %2263 = vst [vmem:[%s13] sm:$0xff] %v2249
  %2264 = vst [vmem:[%s13 + $0x8] sm:$0xff] %v2252
  %2265 = vst [vmem:[%s13 + $0x10] sm:$0xff] %v2257
  %2266 = vst [vmem:[%s13 + $0x18] sm:$0xff] %v2260
  // Predicated region
  $region54: #{rcb_forward.1} parent=0 // pred_check
    _
  $region55: #{rcb_forward.1} parent=0 // pred_check_branch
    %2268 = sbr.rel (0) target = $region57
  $region56: #{rcb_forward.1} parent=0 // pred_region
    _
  $region57: #{rcb_forward.1} parent=0 // pred_fallthru
    _
  // Predicated region
  $region58: #{rcb_forward.1} parent=0 // pred_check
    _
  $region59: #{rcb_forward.1} parent=0 // pred_check_branch
    %2270 = sbr.rel (0) target = $region61
  $region60: #{rcb_forward.1} parent=0 // pred_region
    _
  $region61: #{rcb_forward.1} parent=0 // pred_fallthru
    _

</llo_original>
